<compile_context>
chip_gen: v6e
topology: v6e:2x2x1
jax: 0.10.0
libtpu: 0.0.40
codegen_flags: <defaults>
</compile_context>

<pallas_src>
import jax
import jax.numpy as jnp
from jax import lax
from jax.experimental import pallas as pl
from jax.experimental.pallas import tpu as pltpu

# ----------------------------- model config --------------------------------
INPUT_DIMS = (4, 36, 36)          # (C, H, W): conv stack spatial 36 -> 8 -> 3 -> 1
ACTIONS = 6
HIDDEN = 128                      # NatureCNNHead(hidden_units=128)
ATN_ACTIONS = 25                  # fc_policy_atn output size (fixed in module)
HEAD_COLS = ACTIONS + 1 + ATN_ACTIONS + 1   # 6 + 1 + 25 + 1 = 33 logical head outputs
HEAD_PAD = 128                    # lane-dense padded head width (one unmasked store)

TILE_M_MAX = 512                  # rows per grid step (multiple of 8, VMEM-safe everywhere)
VMEM_LIMIT = 32 * 1024 * 1024     # explicit scoped-VMEM budget (<= defaults on v6e/v7x)


def _round_up(x, m):
    return (x + m - 1) // m * m


# ----------------------------- Pallas kernels -------------------------------
def matmul_bias_relu_kernel(a_ref, w_ref, b_ref, o_ref):
    """o = relu(a @ w + b);  a:[tile_m,K], w:[K,Cout], b:[1,Cout]."""
    acc = jnp.dot(a_ref[...], w_ref[...], preferred_element_type=jnp.float32)
    o_ref[...] = jnp.maximum(acc + b_ref[...], 0.0).astype(o_ref.dtype)


def fused_tail_kernel(p3_ref, w3_ref, b3_ref, fcw_ref, fcb_ref,
                      hw_ref, hb_ref, o_ref):
    """Fused conv3 (as matmul) + ReLU + fc + ReLU + concatenated heads.

    Heads are one [HIDDEN, 128] zero-padded matmul; per-group log_softmax is
    applied on lanes [0:ACTIONS] and [ACTIONS+1 : ACTIONS+1+ATN_ACTIONS] while
    the two value lanes pass through untouched. Output is a single lane-dense
    [tile_n, 128] store.
    """
    f = jnp.dot(p3_ref[...], w3_ref[...], preferred_element_type=jnp.float32)
    f = jnp.maximum(f + b3_ref[...], 0.0)                        # conv3 + ReLU
    h = jnp.dot(f, fcw_ref[...], preferred_element_type=jnp.float32)
    h = jnp.maximum(h + fcb_ref[...], 0.0)                       # fc + ReLU
    logits = jnp.dot(h, hw_ref[...], preferred_element_type=jnp.float32) + hb_ref[...]

    lane = lax.broadcasted_iota(jnp.int32, logits.shape, 1)
    pol_mask = lane < ACTIONS
    atn_mask = (lane >= ACTIONS + 1) & (lane < ACTIONS + 1 + ATN_ACTIONS)

    def masked_lse(mask):
        ml = jnp.where(mask, logits, -1e30)
        m = jnp.max(ml, axis=1, keepdims=True)
        return m + jnp.log(jnp.sum(jnp.exp(ml - m), axis=1, keepdims=True))

    corr = jnp.where(pol_mask, masked_lse(pol_mask),
                     jnp.where(atn_mask, masked_lse(atn_mask), 0.0))
    o_ref[...] = (logits - corr).astype(o_ref.dtype)


# -------------------------- pallas_call wrappers -----------------------------
def _matmul_bias_relu(patches, wmat, bias):
    """relu(patches @ wmat + bias) gridded over rows; handles row padding."""
    m, k = patches.shape
    cout = wmat.shape[1]
    tile_m = min(TILE_M_MAX, _round_up(m, 8))
    m_pad = _round_up(m, tile_m)
    if m_pad != m:
        patches = jnp.pad(patches, ((0, m_pad - m), (0, 0)))
    cost = pl.CostEstimate(
        flops=2 * m_pad * k * cout,
        transcendentals=0,
        bytes_accessed=4 * (m_pad * k + k * cout + m_pad * cout))
    out = pl.pallas_call(
        matmul_bias_relu_kernel,
        out_shape=jax.ShapeDtypeStruct((m_pad, cout), jnp.float32),
        grid_spec=pltpu.PrefetchScalarGridSpec(
            num_scalar_prefetch=0,
            grid=(m_pad // tile_m,),
            in_specs=[pl.BlockSpec((tile_m, k), lambda i: (i, 0)),
                      pl.BlockSpec((k, cout), lambda i: (0, 0)),
                      pl.BlockSpec((1, cout), lambda i: (0, 0))],
            out_specs=pl.BlockSpec((tile_m, cout), lambda i: (i, 0))),
        compiler_params=pltpu.CompilerParams(
            dimension_semantics=("parallel",),
            vmem_limit_bytes=VMEM_LIMIT),
        cost_estimate=cost,
    )(patches, wmat, bias.reshape(1, cout))
    return out[:m] if m_pad != m else out


def _fused_tail(p3, w3m, b3, fcw, fcb, hw, hb):
    """conv3 + fc + 4 heads in one kernel; returns [N, HEAD_PAD] lane-dense slab."""
    n, k3 = p3.shape
    c3 = w3m.shape[1]
    hidden = fcw.shape[1]
    head_pad = hw.shape[1]
    tile_n = min(TILE_M_MAX, _round_up(n, 8))
    n_pad = _round_up(n, tile_n)
    if n_pad != n:
        p3 = jnp.pad(p3, ((0, n_pad - n), (0, 0)))
    cost = pl.CostEstimate(
        flops=2 * n_pad * (k3 * c3 + c3 * hidden + hidden * head_pad),
        transcendentals=2 * n_pad * head_pad,
        bytes_accessed=4 * (n_pad * k3 + k3 * c3 + c3 * hidden
                            + hidden * head_pad + n_pad * head_pad))
    out = pl.pallas_call(
        fused_tail_kernel,
        out_shape=jax.ShapeDtypeStruct((n_pad, head_pad), jnp.float32),
        grid_spec=pltpu.PrefetchScalarGridSpec(
            num_scalar_prefetch=0,
            grid=(n_pad // tile_n,),
            in_specs=[pl.BlockSpec((tile_n, k3), lambda i: (i, 0)),
                      pl.BlockSpec((k3, c3), lambda i: (0, 0)),
                      pl.BlockSpec((1, c3), lambda i: (0, 0)),
                      pl.BlockSpec((c3, hidden), lambda i: (0, 0)),
                      pl.BlockSpec((1, hidden), lambda i: (0, 0)),
                      pl.BlockSpec((hidden, head_pad), lambda i: (0, 0)),
                      pl.BlockSpec((1, head_pad), lambda i: (0, 0))],
            out_specs=pl.BlockSpec((tile_n, head_pad), lambda i: (i, 0))),
        compiler_params=pltpu.CompilerParams(
            dimension_semantics=("parallel",),
            vmem_limit_bytes=VMEM_LIMIT),
        cost_estimate=cost,
    )(p3, w3m, b3.reshape(1, c3), fcw, fcb, hw, hb)
    return out[:n] if n_pad != n else out


# ------------------------------- forward pass --------------------------------
@jax.jit
def attention_model_forward(params, x):
    # prep_for_model: x already float32 matching model dtype -> passthrough.
    # TODO(synk): uint8 -> x/255 scaling branch of prep_for_model not exercised here.
    n = x.shape[0]
    x = jnp.transpose(x, (0, 2, 3, 1))                        # NCHW -> NHWC, once

    # Conv weights flattened to match patch orderings (tiny ops, fused by XLA):
    #   conv1/conv2 patches: (Cin, kh, kw)  == PyTorch OIHW flatten
    #   conv3 "patches" (flattened conv2 NHWC output): (kh, kw, Cin)
    w1m = params["c1w"].reshape(params["c1w"].shape[0], -1).T                       # [256, 32]
    w2m = params["c2w"].reshape(params["c2w"].shape[0], -1).T                       # [512, 64]
    w3m = params["c3w"].transpose(2, 3, 1, 0).reshape(-1, params["c3w"].shape[0])   # [576, 64]

    # All four heads concatenated into one zero-padded 128-lane matmul.
    hw = jnp.concatenate([params["pw"], params["vw"], params["apw"], params["avw"]], axis=1)
    hw = jnp.pad(hw, ((0, 0), (0, HEAD_PAD - HEAD_COLS)))
    hb = jnp.concatenate([params["pb"], params["vb"], params["apb"], params["avb"]], axis=1)
    hb = jnp.pad(hb, ((0, 0), (0, HEAD_PAD - HEAD_COLS)))

    # conv1: 36x36x4 -> 8x8x32
    p1 = lax.conv_general_dilated_patches(
        x, (8, 8), (4, 4), "VALID",
        dimension_numbers=("NHWC", "HWIO", "NHWC"),
        precision=lax.Precision.HIGHEST)                      # [N, 8, 8, 256]
    ho1, wo1 = p1.shape[1], p1.shape[2]
    y1 = _matmul_bias_relu(p1.reshape(n * ho1 * wo1, -1), w1m, params["c1b"])
    y1 = y1.reshape(n, ho1, wo1, -1)                          # NHWC, free reshape

    # conv2: 8x8x32 -> 3x3x64
    p2 = lax.conv_general_dilated_patches(
        y1, (4, 4), (2, 2), "VALID",
        dimension_numbers=("NHWC", "HWIO", "NHWC"),
        precision=lax.Precision.HIGHEST)                      # [N, 3, 3, 512]
    ho2, wo2 = p2.shape[1], p2.shape[2]
    y2 = _matmul_bias_relu(p2.reshape(n * ho2 * wo2, -1), w2m, params["c2b"])  # [9N, 64]

    # conv3 output is 1x1 spatial for 36x36 inputs, so its im2col patches are
    # just the flattened conv2 output (kh, kw, Cin); fuse conv3 + fc + heads.
    assert ho2 == 3 and wo2 == 3, "fused tail assumes conv3 spatial output is 1x1"
    p3 = y2.reshape(n, -1)                                    # [N, 576], free reshape
    out = _fused_tail(p3, w3m, params["c3b"], params["fcw"], params["fcb"], hw, hb)

    return {
        "log_policy": out[:, 0:ACTIONS],
        "atn_log_policy": out[:, ACTIONS + 1:ACTIONS + 1 + ATN_ACTIONS],
        "ext_value": out[:, ACTIONS],                         # .squeeze(dim=1)
        "atn_value": out[:, ACTIONS + 1 + ATN_ACTIONS],       # .squeeze(dim=1)
    }


# ----------------------------- params / reference ---------------------------
def _uniform(key, shape, fan_in):
    bound = 1.0 / jnp.sqrt(jnp.float32(fan_in))
    return jax.random.uniform(key, shape, jnp.float32, -bound, bound)


def init_params(key):
    c_in, _, _ = INPUT_DIMS
    keys = jax.random.split(key, 16)
    p = {}
    # convs (PyTorch OIHW layout)
    p["c1w"] = _uniform(keys[0], (32, c_in, 8, 8), c_in * 64)
    p["c1b"] = _uniform(keys[1], (32,), c_in * 64)
    p["c2w"] = _uniform(keys[2], (64, 32, 4, 4), 32 * 16)
    p["c2b"] = _uniform(keys[3], (64,), 32 * 16)
    p["c3w"] = _uniform(keys[4], (64, 64, 3, 3), 64 * 9)
    p["c3b"] = _uniform(keys[5], (64,), 64 * 9)
    d = 64 * 1 * 1   # conv3 output flattened (for 36x36 input)
    # linears stored as (in, out) = PyTorch W^T
    p["fcw"] = _uniform(keys[6], (d, HIDDEN), d)
    p["fcb"] = _uniform(keys[7], (1, HIDDEN), d)
    p["pw"] = _uniform(keys[8], (HIDDEN, ACTIONS), HIDDEN)
    p["pb"] = _uniform(keys[9], (1, ACTIONS), HIDDEN)
    p["vw"] = _uniform(keys[10], (HIDDEN, 1), HIDDEN)
    p["vb"] = _uniform(keys[11], (1, 1), HIDDEN)
    p["apw"] = _uniform(keys[12], (HIDDEN, ATN_ACTIONS), HIDDEN)
    p["apb"] = _uniform(keys[13], (1, ATN_ACTIONS), HIDDEN)
    p["avw"] = _uniform(keys[14], (HIDDEN, 1), HIDDEN)
    p["avb"] = _uniform(keys[15], (1, 1), HIDDEN)
    return p


def ref_forward(params, x):
    """Pure-JAX reference mirroring the PyTorch forward, for verification."""
    def conv(x, w, b, s):
        y = lax.conv_general_dilated(
            x, w, (s, s), "VALID", dimension_numbers=("NCHW", "OIHW", "NCHW"))
        return jax.nn.relu(y + b[None, :, None, None])

    x = conv(x, params["c1w"], params["c1b"], 4)
    x = conv(x, params["c2w"], params["c2b"], 2)
    x = conv(x, params["c3w"], params["c3b"], 1)
    flat = x.reshape(x.shape[0], -1)
    h = jax.nn.relu(flat @ params["fcw"] + params["fcb"])
    lp = jax.nn.log_softmax(h @ params["pw"] + params["pb"], axis=1)
    v = (h @ params["vw"] + params["vb"])[:, 0]
    alp = jax.nn.log_softmax(h @ params["apw"] + params["apb"], axis=1)
    av = (h @ params["avw"] + params["avb"])[:, 0]
    return {"log_policy": lp, "atn_log_policy": alp, "ext_value": v, "atn_value": av}


# --------------------------------- main --------------------------------------
if __name__ == "__main__":
    key = jax.random.PRNGKey(0)
    pkey, xkey = jax.random.split(key)
    params = init_params(pkey)
    x = jax.random.normal(xkey, (2, *INPUT_DIMS), jnp.float32)   # [N, C, H, W]

    out = attention_model_forward(params, x)
    jax.block_until_ready(out)

    ref = ref_forward(params, x)
    for k in ("log_policy", "atn_log_policy", "ext_value", "atn_value"):
        assert out[k].shape == ref[k].shape, (k, out[k].shape, ref[k].shape)
        assert jnp.allclose(out[k], ref[k], atol=1e-4, rtol=1e-4), k

    print("KERNEL_OK")
</pallas_src>

<mosaic_0001>
module attributes {stable_mosaic.version = 11 : i64} {
  func.func @matmul_bias_relu_kernel(%arg0: i32, %arg1: memref<128x256xf32, #tpu.memory_space<vmem>>, %arg2: memref<256x32xf32, #tpu.memory_space<vmem>>, %arg3: memref<1x32xf32, #tpu.memory_space<vmem>>, %arg4: memref<128x32xf32, #tpu.memory_space<vmem>>) attributes {dimension_semantics = [#tpu.dimension_semantics<parallel>], iteration_bounds = array<i64: 1>, scalar_prefetch = 0 : i64, scratch_operands = 0 : i64, tpu.core_type = #tpu.core_type<tc>, window_params = [{transform_indices = @transform_0, window_bounds = array<i64: 128, 256>}, {pipeline_mode = #tpu.pipeline_mode<synchronous>, transform_indices = @transform_1, window_bounds = array<i64: 256, 32>}, {pipeline_mode = #tpu.pipeline_mode<synchronous>, transform_indices = @transform_2, window_bounds = array<i64: 1, 32>}, {transform_indices = @transform_3, window_bounds = array<i64: 128, 32>}]} {
    %c0 = arith.constant 0 : index
    %c0_0 = arith.constant 0 : index
    %0 = vector.load %arg1[%c0, %c0_0] : memref<128x256xf32, #tpu.memory_space<vmem>>, vector<128x256xf32>
    %c0_1 = arith.constant 0 : index
    %c0_2 = arith.constant 0 : index
    %1 = vector.load %arg2[%c0_1, %c0_2] : memref<256x32xf32, #tpu.memory_space<vmem>>, vector<256x32xf32>
    %cst = arith.constant dense<0.000000e+00> : vector<128x32xf32>
    %2 = tpu.matmul %0, %1, %cst {dimension_numbers = #tpu.dot_dimension_numbers<[1], [0], [0], [1], [0, 0, 1, 1], [], []>} : vector<128x256xf32>, vector<256x32xf32>, vector<128x32xf32> -> vector<128x32xf32>
    %c0_3 = arith.constant 0 : index
    %c0_4 = arith.constant 0 : index
    %3 = vector.load %arg3[%c0_3, %c0_4] : memref<1x32xf32, #tpu.memory_space<vmem>>, vector<1x32xf32>
    %4 = vector.broadcast %3 : vector<1x32xf32> to vector<128x32xf32>
    %5 = arith.addf %2, %4 : vector<128x32xf32>
    %cst_5 = arith.constant 0.000000e+00 : f32
    %6 = vector.broadcast %cst_5 : f32 to vector<128x32xf32>
    %7 = arith.maximumf %5, %6 : vector<128x32xf32>
    %c0_6 = arith.constant 0 : index
    %c0_7 = arith.constant 0 : index
    %8 = vector.load %arg4[%c0_6, %c0_7] : memref<128x32xf32, #tpu.memory_space<vmem>>, vector<128x32xf32>
    tpu.vector_store %arg4[%c0_6, %c0_7], %7 {strides = array<i32>} : memref<128x32xf32, #tpu.memory_space<vmem>>, vector<128x32xf32>,
    return
  }
  func.func @transform_0(%arg0: i32) -> (i32, i32) {
    %c0_i32 = arith.constant 0 : i32
    %c0_i32_0 = arith.constant 0 : i32
    return %arg0, %c0_i32 : i32, i32
  }
  func.func @transform_1(%arg0: i32) -> (i32, i32) {
    %c0_i32 = arith.constant 0 : i32
    %c0_i32_0 = arith.constant 0 : i32
    %c0_i32_1 = arith.constant 0 : i32
    return %c0_i32, %c0_i32_0 : i32, i32
  }
  func.func @transform_2(%arg0: i32) -> (i32, i32) {
    %c0_i32 = arith.constant 0 : i32
    %c0_i32_0 = arith.constant 0 : i32
    %c0_i32_1 = arith.constant 0 : i32
    return %c0_i32, %c0_i32_0 : i32, i32
  }
  func.func @transform_3(%arg0: i32) -> (i32, i32) {
    %c0_i32 = arith.constant 0 : i32
    %c0_i32_0 = arith.constant 0 : i32
    return %arg0, %c0_i32 : i32, i32
  }
}

module attributes {stable_mosaic.version = 11 : i64} {
  func.func @matmul_bias_relu_kernel(%arg0: i32, %arg1: memref<24x512xf32, #tpu.memory_space<vmem>>, %arg2: memref<512x64xf32, #tpu.memory_space<vmem>>, %arg3: memref<1x64xf32, #tpu.memory_space<vmem>>, %arg4: memref<24x64xf32, #tpu.memory_space<vmem>>) attributes {dimension_semantics = [#tpu.dimension_semantics<parallel>], iteration_bounds = array<i64: 1>, scalar_prefetch = 0 : i64, scratch_operands = 0 : i64, tpu.core_type = #tpu.core_type<tc>, window_params = [{transform_indices = @transform_0, window_bounds = array<i64: 24, 512>}, {pipeline_mode = #tpu.pipeline_mode<synchronous>, transform_indices = @transform_1, window_bounds = array<i64: 512, 64>}, {pipeline_mode = #tpu.pipeline_mode<synchronous>, transform_indices = @transform_2, window_bounds = array<i64: 1, 64>}, {transform_indices = @transform_3, window_bounds = array<i64: 24, 64>}]} {
    %c0 = arith.constant 0 : index
    %c0_0 = arith.constant 0 : index
    %0 = vector.load %arg1[%c0, %c0_0] : memref<24x512xf32, #tpu.memory_space<vmem>>, vector<24x512xf32>
    %c0_1 = arith.constant 0 : index
    %c0_2 = arith.constant 0 : index
    %1 = vector.load %arg2[%c0_1, %c0_2] : memref<512x64xf32, #tpu.memory_space<vmem>>, vector<512x64xf32>
    %cst = arith.constant dense<0.000000e+00> : vector<24x64xf32>
    %2 = tpu.matmul %0, %1, %cst {dimension_numbers = #tpu.dot_dimension_numbers<[1], [0], [0], [1], [0, 0, 1, 1], [], []>} : vector<24x512xf32>, vector<512x64xf32>, vector<24x64xf32> -> vector<24x64xf32>
    %c0_3 = arith.constant 0 : index
    %c0_4 = arith.constant 0 : index
    %3 = vector.load %arg3[%c0_3, %c0_4] : memref<1x64xf32, #tpu.memory_space<vmem>>, vector<1x64xf32>
    %4 = vector.broadcast %3 : vector<1x64xf32> to vector<24x64xf32>
    %5 = arith.addf %2, %4 : vector<24x64xf32>
    %cst_5 = arith.constant 0.000000e+00 : f32
    %6 = vector.broadcast %cst_5 : f32 to vector<24x64xf32>
    %7 = arith.maximumf %5, %6 : vector<24x64xf32>
    %c0_6 = arith.constant 0 : index
    %c0_7 = arith.constant 0 : index
    %8 = vector.load %arg4[%c0_6, %c0_7] : memref<24x64xf32, #tpu.memory_space<vmem>>, vector<24x64xf32>
    tpu.vector_store %arg4[%c0_6, %c0_7], %7 {strides = array<i32>} : memref<24x64xf32, #tpu.memory_space<vmem>>, vector<24x64xf32>,
    return
  }
  func.func @transform_0(%arg0: i32) -> (i32, i32) {
    %c0_i32 = arith.constant 0 : i32
    %c0_i32_0 = arith.constant 0 : i32
    return %arg0, %c0_i32 : i32, i32
  }
  func.func @transform_1(%arg0: i32) -> (i32, i32) {
    %c0_i32 = arith.constant 0 : i32
    %c0_i32_0 = arith.constant 0 : i32
    %c0_i32_1 = arith.constant 0 : i32
    return %c0_i32, %c0_i32_0 : i32, i32
  }
  func.func @transform_2(%arg0: i32) -> (i32, i32) {
    %c0_i32 = arith.constant 0 : i32
    %c0_i32_0 = arith.constant 0 : i32
    %c0_i32_1 = arith.constant 0 : i32
    return %c0_i32, %c0_i32_0 : i32, i32
  }
  func.func @transform_3(%arg0: i32) -> (i32, i32) {
    %c0_i32 = arith.constant 0 : i32
    %c0_i32_0 = arith.constant 0 : i32
    return %arg0, %c0_i32 : i32, i32
  }
}

module attributes {stable_mosaic.version = 11 : i64} {
  func.func @fused_tail_kernel(%arg0: i32, %arg1: memref<8x576xf32, #tpu.memory_space<vmem>>, %arg2: memref<576x64xf32, #tpu.memory_space<vmem>>, %arg3: memref<1x64xf32, #tpu.memory_space<vmem>>, %arg4: memref<64x128xf32, #tpu.memory_space<vmem>>, %arg5: memref<1x128xf32, #tpu.memory_space<vmem>>, %arg6: memref<128x128xf32, #tpu.memory_space<vmem>>, %arg7: memref<1x128xf32, #tpu.memory_space<vmem>>, %arg8: memref<8x128xf32, #tpu.memory_space<vmem>>) attributes {dimension_semantics = [#tpu.dimension_semantics<parallel>], iteration_bounds = array<i64: 1>, scalar_prefetch = 0 : i64, scratch_operands = 0 : i64, tpu.core_type = #tpu.core_type<tc>, window_params = [{transform_indices = @transform_0, window_bounds = array<i64: 8, 576>}, {pipeline_mode = #tpu.pipeline_mode<synchronous>, transform_indices = @transform_1, window_bounds = array<i64: 576, 64>}, {pipeline_mode = #tpu.pipeline_mode<synchronous>, transform_indices = @transform_2, window_bounds = array<i64: 1, 64>}, {pipeline_mode = #tpu.pipeline_mode<synchronous>, transform_indices = @transform_3, window_bounds = array<i64: 64, 128>}, {pipeline_mode = #tpu.pipeline_mode<synchronous>, transform_indices = @transform_4, window_bounds = array<i64: 1, 128>}, {pipeline_mode = #tpu.pipeline_mode<synchronous>, transform_indices = @transform_5, window_bounds = array<i64: 128, 128>}, {pipeline_mode = #tpu.pipeline_mode<synchronous>, transform_indices = @transform_6, window_bounds = array<i64: 1, 128>}, {transform_indices = @transform_7, window_bounds = array<i64: 8, 128>}]} {
    %c0 = arith.constant 0 : index
    %c0_0 = arith.constant 0 : index
    %0 = vector.load %arg1[%c0, %c0_0] : memref<8x576xf32, #tpu.memory_space<vmem>>, vector<8x576xf32>
    %c0_1 = arith.constant 0 : index
    %c0_2 = arith.constant 0 : index
    %1 = vector.load %arg2[%c0_1, %c0_2] : memref<576x64xf32, #tpu.memory_space<vmem>>, vector<576x64xf32>
    %cst = arith.constant dense<0.000000e+00> : vector<8x64xf32>
    %2 = tpu.matmul %0, %1, %cst {dimension_numbers = #tpu.dot_dimension_numbers<[1], [0], [0], [1], [0, 0, 1, 1], [], []>} : vector<8x576xf32>, vector<576x64xf32>, vector<8x64xf32> -> vector<8x64xf32>
    %c0_3 = arith.constant 0 : index
    %c0_4 = arith.constant 0 : index
    %3 = vector.load %arg3[%c0_3, %c0_4] : memref<1x64xf32, #tpu.memory_space<vmem>>, vector<1x64xf32>
    %4 = vector.broadcast %3 : vector<1x64xf32> to vector<8x64xf32>
    %5 = arith.addf %2, %4 : vector<8x64xf32>
    %cst_5 = arith.constant 0.000000e+00 : f32
    %6 = vector.broadcast %cst_5 : f32 to vector<8x64xf32>
    %7 = arith.maximumf %5, %6 : vector<8x64xf32>
    %c0_6 = arith.constant 0 : index
    %c0_7 = arith.constant 0 : index
    %8 = vector.load %arg4[%c0_6, %c0_7] : memref<64x128xf32, #tpu.memory_space<vmem>>, vector<64x128xf32>
    %cst_8 = arith.constant dense<0.000000e+00> : vector<8x128xf32>
    %9 = tpu.matmul %7, %8, %cst_8 {dimension_numbers = #tpu.dot_dimension_numbers<[1], [0], [0], [1], [0, 0, 1, 1], [], []>} : vector<8x64xf32>, vector<64x128xf32>, vector<8x128xf32> -> vector<8x128xf32>
    %c0_9 = arith.constant 0 : index
    %c0_10 = arith.constant 0 : index
    %10 = vector.load %arg5[%c0_9, %c0_10] : memref<1x128xf32, #tpu.memory_space<vmem>>, vector<1x128xf32>
    %11 = vector.broadcast %10 : vector<1x128xf32> to vector<8x128xf32>
    %12 = arith.addf %9, %11 : vector<8x128xf32>
    %cst_11 = arith.constant 0.000000e+00 : f32
    %13 = vector.broadcast %cst_11 : f32 to vector<8x128xf32>
    %14 = arith.maximumf %12, %13 : vector<8x128xf32>
    %c0_12 = arith.constant 0 : index
    %c0_13 = arith.constant 0 : index
    %15 = vector.load %arg6[%c0_12, %c0_13] : memref<128x128xf32, #tpu.memory_space<vmem>>, vector<128x128xf32>
    %cst_14 = arith.constant dense<0.000000e+00> : vector<8x128xf32>
    %16 = tpu.matmul %14, %15, %cst_14 {dimension_numbers = #tpu.dot_dimension_numbers<[1], [0], [0], [1], [0, 0, 1, 1], [], []>} : vector<8x128xf32>, vector<128x128xf32>, vector<8x128xf32> -> vector<8x128xf32>
    %c0_15 = arith.constant 0 : index
    %c0_16 = arith.constant 0 : index
    %17 = vector.load %arg7[%c0_15, %c0_16] : memref<1x128xf32, #tpu.memory_space<vmem>>, vector<1x128xf32>
    %18 = vector.broadcast %17 : vector<1x128xf32> to vector<8x128xf32>
    %19 = arith.addf %16, %18 : vector<8x128xf32>
    %20 = tpu.iota {dimensions = array<i32: 1>} : vector<8x128xi32>
    %c6_i32 = arith.constant 6 : i32
    %21 = vector.broadcast %c6_i32 : i32 to vector<8x128xi32>
    %22 = arith.cmpi slt, %20, %21 : vector<8x128xi32>
    %c7_i32 = arith.constant 7 : i32
    %23 = vector.broadcast %c7_i32 : i32 to vector<8x128xi32>
    %24 = arith.cmpi sge, %20, %23 : vector<8x128xi32>
    %c32_i32 = arith.constant 32 : i32
    %25 = vector.broadcast %c32_i32 : i32 to vector<8x128xi32>
    %26 = arith.cmpi slt, %20, %25 : vector<8x128xi32>
    %27 = arith.andi %24, %26 : vector<8x128xi1>
    %cst_17 = arith.constant -1.000000e+30 : f32
    %28 = vector.broadcast %cst_17 : f32 to vector<8x128xf32>
    %29 = arith.select %22, %19, %28 : vector<8x128xi1>, vector<8x128xf32>
    %cst_18 = arith.constant dense<0xFF800000> : vector<8xf32>
    %30 = vector.multi_reduction <maximumf>, %29, %cst_18 [1] : vector<8x128xf32> to vector<8xf32>
    %31 = vector.shape_cast %30 : vector<8xf32> to vector<8x1xf32>
    %32 = vector.broadcast %31 : vector<8x1xf32> to vector<8x128xf32>
    %33 = arith.subf %29, %32 : vector<8x128xf32>
    %34 = math.exp %33 : vector<8x128xf32>
    %cst_19 = arith.constant dense<0.000000e+00> : vector<8xf32>
    %35 = vector.multi_reduction <add>, %34, %cst_19 [1] : vector<8x128xf32> to vector<8xf32>
    %36 = vector.shape_cast %35 : vector<8xf32> to vector<8x1xf32>
    %37 = math.log %36 : vector<8x1xf32>
    %38 = arith.addf %31, %37 : vector<8x1xf32>
    %cst_20 = arith.constant -1.000000e+30 : f32
    %39 = vector.broadcast %cst_20 : f32 to vector<8x128xf32>
    %40 = arith.select %27, %19, %39 : vector<8x128xi1>, vector<8x128xf32>
    %cst_21 = arith.constant dense<0xFF800000> : vector<8xf32>
    %41 = vector.multi_reduction <maximumf>, %40, %cst_21 [1] : vector<8x128xf32> to vector<8xf32>
    %42 = vector.shape_cast %41 : vector<8xf32> to vector<8x1xf32>
    %43 = vector.broadcast %42 : vector<8x1xf32> to vector<8x128xf32>
    %44 = arith.subf %40, %43 : vector<8x128xf32>
    %45 = math.exp %44 : vector<8x128xf32>
    %cst_22 = arith.constant dense<0.000000e+00> : vector<8xf32>
    %46 = vector.multi_reduction <add>, %45, %cst_22 [1] : vector<8x128xf32> to vector<8xf32>
    %47 = vector.shape_cast %46 : vector<8xf32> to vector<8x1xf32>
    %48 = math.log %47 : vector<8x1xf32>
    %49 = arith.addf %42, %48 : vector<8x1xf32>
    %cst_23 = arith.constant 0.000000e+00 : f32
    %50 = vector.shape_cast %49 : vector<8x1xf32> to vector<8x1xf32>
    %51 = vector.broadcast %50 : vector<8x1xf32> to vector<8x128xf32>
    %52 = vector.broadcast %cst_23 : f32 to vector<8x128xf32>
    %53 = arith.select %27, %51, %52 : vector<8x128xi1>, vector<8x128xf32>
    %54 = vector.shape_cast %38 : vector<8x1xf32> to vector<8x1xf32>
    %55 = vector.broadcast %54 : vector<8x1xf32> to vector<8x128xf32>
    %56 = arith.select %22, %55, %53 : vector<8x128xi1>, vector<8x128xf32>
    %57 = arith.subf %19, %56 : vector<8x128xf32>
    %c0_24 = arith.constant 0 : index
    %c0_25 = arith.constant 0 : index
    %58 = vector.load %arg8[%c0_24, %c0_25] : memref<8x128xf32, #tpu.memory_space<vmem>>, vector<8x128xf32>
    tpu.vector_store %arg8[%c0_24, %c0_25], %57 {strides = array<i32>} : memref<8x128xf32, #tpu.memory_space<vmem>>, vector<8x128xf32>,
    return
  }
  func.func @transform_0(%arg0: i32) -> (i32, i32) {
    %c0_i32 = arith.constant 0 : i32
    %c0_i32_0 = arith.constant 0 : i32
    return %arg0, %c0_i32 : i32, i32
  }
  func.func @transform_1(%arg0: i32) -> (i32, i32) {
    %c0_i32 = arith.constant 0 : i32
    %c0_i32_0 = arith.constant 0 : i32
    %c0_i32_1 = arith.constant 0 : i32
    return %c0_i32, %c0_i32_0 : i32, i32
  }
  func.func @transform_2(%arg0: i32) -> (i32, i32) {
    %c0_i32 = arith.constant 0 : i32
    %c0_i32_0 = arith.constant 0 : i32
    %c0_i32_1 = arith.constant 0 : i32
    return %c0_i32, %c0_i32_0 : i32, i32
  }
  func.func @transform_3(%arg0: i32) -> (i32, i32) {
    %c0_i32 = arith.constant 0 : i32
    %c0_i32_0 = arith.constant 0 : i32
    %c0_i32_1 = arith.constant 0 : i32
    return %c0_i32, %c0_i32_0 : i32, i32
  }
  func.func @transform_4(%arg0: i32) -> (i32, i32) {
    %c0_i32 = arith.constant 0 : i32
    %c0_i32_0 = arith.constant 0 : i32
    %c0_i32_1 = arith.constant 0 : i32
    return %c0_i32, %c0_i32_0 : i32, i32
  }
  func.func @transform_5(%arg0: i32) -> (i32, i32) {
    %c0_i32 = arith.constant 0 : i32
    %c0_i32_0 = arith.constant 0 : i32
    %c0_i32_1 = arith.constant 0 : i32
    return %c0_i32, %c0_i32_0 : i32, i32
  }
  func.func @transform_6(%arg0: i32) -> (i32, i32) {
    %c0_i32 = arith.constant 0 : i32
    %c0_i32_0 = arith.constant 0 : i32
    %c0_i32_1 = arith.constant 0 : i32
    return %c0_i32, %c0_i32_0 : i32, i32
  }
  func.func @transform_7(%arg0: i32) -> (i32, i32) {
    %c0_i32 = arith.constant 0 : i32
    %c0_i32_0 = arith.constant 0 : i32
    return %arg0, %c0_i32 : i32, i32
  }
}

</mosaic_0001>

<llo_original>
// kernel: attention_model_forward.3
$region0: #{attention_model_forward.3}
  #allocation0 [shape = 'u32[]', space=smem, size = 0x4, offset = 0x4, fixed_abs, tag = 'smem constant byte address 0x4 - core index']
  #allocation1 [shape = 'u32[144,128]{1,0:T(1,128)}', space=vmem, size = 0x12000, scoped, tag = 'internal scratch']
  %s0 = inlined_call_operand.vmem [shape: f32[128,256], index: 0, kind: input, shape index: {}]
  %s1 = inlined_call_operand.vmem [shape: f32[256,32], index: 1, kind: input, shape index: {}]
  %s2 = inlined_call_operand.vmem [shape: f32[1,32], index: 2, kind: input, shape index: {}]
  %s3 = inlined_call_operand.vmem [shape: f32[128,32], index: 3, kind: output, shape index: {}]
  %s4 = sld [smem:[#allocation0]]
  $region22: #{attention_model_forward.3} parent=0
    _
  %s6 = ssub.s32 1, %s4
  %s7 = scalar_select 0, %s6, %s4
  // Predicated region
  $region2: #{attention_model_forward.3} parent=0 // pred_check
    _
  $region3: #{attention_model_forward.3} parent=0 // pred_check_branch
    %9 = sbr.rel (0) target = $region5
  $region4: #{attention_model_forward.3} parent=0 // pred_region
    _
  $region5: #{attention_model_forward.3} parent=0 // pred_fallthru
    _
  // Predicated region
  $region6: #{attention_model_forward.3} parent=0 // pred_check
    _
  $region7: #{attention_model_forward.3} parent=0 // pred_check_branch
    %11 = sbr.rel (0) target = $region9
  $region8: #{attention_model_forward.3} parent=0 // pred_region
    _
  $region9: #{attention_model_forward.3} parent=0 // pred_fallthru
    _
  // Predicated region
  $region10: #{attention_model_forward.3} parent=0 // pred_check
    _
  $region11: #{attention_model_forward.3} parent=0 // pred_check_branch
    %13 = sbr.rel (0) target = $region13
  $region12: #{attention_model_forward.3} parent=0 // pred_region
    _
  $region13: #{attention_model_forward.3} parent=0 // pred_fallthru
    _
  %v14 = vld [vmem:[%s0] sm:$0xff]
  %v15 = vld [vmem:[%s0 + $0x8] sm:$0xff]
  %v16 = vld [vmem:[%s0 + $0x10] sm:$0xff]
  %v17 = vld [vmem:[%s0 + $0x18] sm:$0xff]
  %v18 = vld [vmem:[%s0 + $0x20] sm:$0xff]
  %v19 = vld [vmem:[%s0 + $0x28] sm:$0xff]
  %v20 = vld [vmem:[%s0 + $0x30] sm:$0xff]
  %v21 = vld [vmem:[%s0 + $0x38] sm:$0xff]
  %v22 = vld [vmem:[%s0 + $0x40] sm:$0xff]
  %v23 = vld [vmem:[%s0 + $0x48] sm:$0xff]
  %v24 = vld [vmem:[%s0 + $0x50] sm:$0xff]
  %v25 = vld [vmem:[%s0 + $0x58] sm:$0xff]
  %v26 = vld [vmem:[%s0 + $0x60] sm:$0xff]
  %v27 = vld [vmem:[%s0 + $0x68] sm:$0xff]
  %v28 = vld [vmem:[%s0 + $0x70] sm:$0xff]
  %v29 = vld [vmem:[%s0 + $0x78] sm:$0xff]
  %v30 = vld [vmem:[%s0 + $0x80] sm:$0xff]
  %v31 = vld [vmem:[%s0 + $0x88] sm:$0xff]
  %v32 = vld [vmem:[%s0 + $0x90] sm:$0xff]
  %v33 = vld [vmem:[%s0 + $0x98] sm:$0xff]
  %v34 = vld [vmem:[%s0 + $0xa0] sm:$0xff]
  %v35 = vld [vmem:[%s0 + $0xa8] sm:$0xff]
  %v36 = vld [vmem:[%s0 + $0xb0] sm:$0xff]
  %v37 = vld [vmem:[%s0 + $0xb8] sm:$0xff]
  %v38 = vld [vmem:[%s0 + $0xc0] sm:$0xff]
  %v39 = vld [vmem:[%s0 + $0xc8] sm:$0xff]
  %v40 = vld [vmem:[%s0 + $0xd0] sm:$0xff]
  %v41 = vld [vmem:[%s0 + $0xd8] sm:$0xff]
  %v42 = vld [vmem:[%s0 + $0xe0] sm:$0xff]
  %v43 = vld [vmem:[%s0 + $0xe8] sm:$0xff]
  %v44 = vld [vmem:[%s0 + $0xf0] sm:$0xff]
  %v45 = vld [vmem:[%s0 + $0xf8] sm:$0xff]
  %v46 = vld [vmem:[%s1] sm:$0xff]
  %v47 = vld [vmem:[%s1 + $0x8] sm:$0xff]
  %v48 = vld [vmem:[%s1 + $0x10] sm:$0xff]
  %v49 = vld [vmem:[%s1 + $0x18] sm:$0xff]
  %v50 = vld [vmem:[%s1 + $0x20] sm:$0xff]
  %v51 = vld [vmem:[%s1 + $0x28] sm:$0xff]
  %v52 = vld [vmem:[%s1 + $0x30] sm:$0xff]
  %v53 = vld [vmem:[%s1 + $0x38] sm:$0xff]
  %v54 = vld [vmem:[%s1 + $0x40] sm:$0xff]
  %v55 = vld [vmem:[%s1 + $0x48] sm:$0xff]
  %v56 = vld [vmem:[%s1 + $0x50] sm:$0xff]
  %v57 = vld [vmem:[%s1 + $0x58] sm:$0xff]
  %v58 = vld [vmem:[%s1 + $0x60] sm:$0xff]
  %v59 = vld [vmem:[%s1 + $0x68] sm:$0xff]
  %v60 = vld [vmem:[%s1 + $0x70] sm:$0xff]
  %v61 = vld [vmem:[%s1 + $0x78] sm:$0xff]
  %v62 = vld [vmem:[%s1 + $0x80] sm:$0xff]
  %v63 = vld [vmem:[%s1 + $0x88] sm:$0xff]
  %v64 = vld [vmem:[%s1 + $0x90] sm:$0xff]
  %v65 = vld [vmem:[%s1 + $0x98] sm:$0xff]
  %v66 = vld [vmem:[%s1 + $0xa0] sm:$0xff]
  %v67 = vld [vmem:[%s1 + $0xa8] sm:$0xff]
  %v68 = vld [vmem:[%s1 + $0xb0] sm:$0xff]
  %v69 = vld [vmem:[%s1 + $0xb8] sm:$0xff]
  %v70 = vld [vmem:[%s1 + $0xc0] sm:$0xff]
  %v71 = vld [vmem:[%s1 + $0xc8] sm:$0xff]
  %v72 = vld [vmem:[%s1 + $0xd0] sm:$0xff]
  %v73 = vld [vmem:[%s1 + $0xd8] sm:$0xff]
  %v74 = vld [vmem:[%s1 + $0xe0] sm:$0xff]
  %v75 = vld [vmem:[%s1 + $0xe8] sm:$0xff]
  %v76 = vld [vmem:[%s1 + $0xf0] sm:$0xff]
  %v77 = vld [vmem:[%s1 + $0xf8] sm:$0xff]
  %v78 = vld [vmem:[%s2] sm:$0x1]
  %v80 = vlaneseq
  %v81 = vshrl.u32 %v80, 7
  %v82 = vsub.s32 0, %v81
  %v83 = vrot.slane %v78, %v82
  %85 = vmatprep.subr.mxu0 0.0
  %86 = vmatpush1.msra.mxu0 %v61
  %87 = vmatprep.subr.mxu0 0.0
  %88 = vmatpush1.msra.mxu0 %v60
  %89 = vmatprep.subr.mxu0 0.0
  %90 = vmatpush1.msra.mxu0 %v59
  %91 = vmatprep.subr.mxu0 0.0
  %92 = vmatpush1.msra.mxu0 %v58
  %93 = vmatprep.subr.mxu0 0.0
  %94 = vmatpush1.msra.mxu0 %v57
  %95 = vmatprep.subr.mxu0 0.0
  %96 = vmatpush1.msra.mxu0 %v56
  %97 = vmatprep.subr.mxu0 0.0
  %98 = vmatpush1.msra.mxu0 %v55
  %99 = vmatprep.subr.mxu0 0.0
  %100 = vmatpush1.msra.mxu0 %v54
  %101 = vmatprep.subr.mxu0 0.0
  %102 = vmatpush1.msra.mxu0 %v53
  %103 = vmatprep.subr.mxu0 0.0
  %104 = vmatpush1.msra.mxu0 %v52
  %105 = vmatprep.subr.mxu0 0.0
  %106 = vmatpush1.msra.mxu0 %v51
  %107 = vmatprep.subr.mxu0 0.0
  %108 = vmatpush1.msra.mxu0 %v50
  %109 = vmatprep.subr.mxu0 0.0
  %110 = vmatpush1.msra.mxu0 %v49
  %111 = vmatprep.subr.mxu0 0.0
  %112 = vmatpush1.msra.mxu0 %v48
  %113 = vmatprep.subr.mxu0 0.0
  %114 = vmatpush1.msra.mxu0 %v47
  %115 = vmatprep.subr.mxu0 0.0
  %116 = vmatpush1.msra.mxu0 %v46
  %117 = vmatprep.subr.mxu0 0.0
  %118 = vmatpush2.msra.mxu0 %v77
  %119 = vmatprep.subr.mxu0 0.0
  %120 = vmatpush2.msra.mxu0 %v76
  %121 = vmatprep.subr.mxu0 0.0
  %122 = vmatpush2.msra.mxu0 %v75
  %123 = vmatprep.subr.mxu0 0.0
  %124 = vmatpush2.msra.mxu0 %v74
  %125 = vmatprep.subr.mxu0 0.0
  %126 = vmatpush2.msra.mxu0 %v73
  %127 = vmatprep.subr.mxu0 0.0
  %128 = vmatpush2.msra.mxu0 %v72
  %129 = vmatprep.subr.mxu0 0.0
  %130 = vmatpush2.msra.mxu0 %v71
  %131 = vmatprep.subr.mxu0 0.0
  %132 = vmatpush2.msra.mxu0 %v70
  %133 = vmatprep.subr.mxu0 0.0
  %134 = vmatpush2.msra.mxu0 %v69
  %135 = vmatprep.subr.mxu0 0.0
  %136 = vmatpush2.msra.mxu0 %v68
  %137 = vmatprep.subr.mxu0 0.0
  %138 = vmatpush2.msra.mxu0 %v67
  %139 = vmatprep.subr.mxu0 0.0
  %140 = vmatpush2.msra.mxu0 %v66
  %141 = vmatprep.subr.mxu0 0.0
  %142 = vmatpush2.msra.mxu0 %v65
  %143 = vmatprep.subr.mxu0 0.0
  %144 = vmatpush2.msra.mxu0 %v64
  %145 = vmatprep.subr.mxu0 0.0
  %146 = vmatpush2.msra.mxu0 %v63
  %147 = vmatprep.subr.mxu0 0.0
  %148 = vmatpush2.msra.mxu0 %v62
  %149 = vmatprep.mubr.f32.mxu0 %v15
  %150 = vmatmul.mubr.f32.gmra.mxu0 %v14
  %v151 = vpop.f32.mrf.mxu0
  %v152 = vadd.f32 %v83, %v151
  %v153 = vpop.f32.mrf.mxu0
  %154 = vmatprep.mubr.f32.mxu0 %v17
  %155 = vmatmul.mubr.f32.gmra.mxu0 %v16
  %v156 = vpop.f32.mrf.mxu0
  %v157 = vadd.f32 %v83, %v156
  %v158 = vpop.f32.mrf.mxu0
  %159 = vmatprep.mubr.f32.mxu0 %v19
  %160 = vmatmul.mubr.f32.gmra.mxu0 %v18
  %v161 = vpop.f32.mrf.mxu0
  %v162 = vadd.f32 %v83, %v161
  %v163 = vpop.f32.mrf.mxu0
  %164 = vmatprep.mubr.f32.mxu0 %v21
  %165 = vmatmul.mubr.f32.gmra.mxu0 %v20
  %v166 = vpop.f32.mrf.mxu0
  %v167 = vadd.f32 %v83, %v166
  %v168 = vpop.f32.mrf.mxu0
  %169 = vmatprep.mubr.f32.mxu0 %v23
  %170 = vmatmul.mubr.f32.gmra.mxu0 %v22
  %v171 = vpop.f32.mrf.mxu0
  %v172 = vadd.f32 %v83, %v171
  %v173 = vpop.f32.mrf.mxu0
  %174 = vmatprep.mubr.f32.mxu0 %v25
  %175 = vmatmul.mubr.f32.gmra.mxu0 %v24
  %v176 = vpop.f32.mrf.mxu0
  %v177 = vadd.f32 %v83, %v176
  %v178 = vpop.f32.mrf.mxu0
  %179 = vmatprep.mubr.f32.mxu0 %v27
  %180 = vmatmul.mubr.f32.gmra.mxu0 %v26
  %v181 = vpop.f32.mrf.mxu0
  %v182 = vadd.f32 %v83, %v181
  %v183 = vpop.f32.mrf.mxu0
  %184 = vmatprep.mubr.f32.mxu0 %v29
  %185 = vmatmul.mubr.f32.gmra.mxu0 %v28
  %v186 = vpop.f32.mrf.mxu0
  %v187 = vadd.f32 %v83, %v186
  %v188 = vpop.f32.mrf.mxu0
  %189 = vmatprep.mubr.f32.mxu0 %v31
  %190 = vmatmul.mubr.f32.gmra.mxu0 %v30
  %v191 = vpop.f32.mrf.mxu0
  %v192 = vadd.f32 %v83, %v191
  %v193 = vpop.f32.mrf.mxu0
  %194 = vmatprep.mubr.f32.mxu0 %v33
  %195 = vmatmul.mubr.f32.gmra.mxu0 %v32
  %v196 = vpop.f32.mrf.mxu0
  %v197 = vadd.f32 %v83, %v196
  %v198 = vpop.f32.mrf.mxu0
  %199 = vmatprep.mubr.f32.mxu0 %v35
  %200 = vmatmul.mubr.f32.gmra.mxu0 %v34
  %v201 = vpop.f32.mrf.mxu0
  %v202 = vadd.f32 %v83, %v201
  %v203 = vpop.f32.mrf.mxu0
  %204 = vmatprep.mubr.f32.mxu0 %v37
  %205 = vmatmul.mubr.f32.gmra.mxu0 %v36
  %v206 = vpop.f32.mrf.mxu0
  %v207 = vadd.f32 %v83, %v206
  %v208 = vpop.f32.mrf.mxu0
  %209 = vmatprep.mubr.f32.mxu0 %v39
  %210 = vmatmul.mubr.f32.gmra.mxu0 %v38
  %v211 = vpop.f32.mrf.mxu0
  %v212 = vadd.f32 %v83, %v211
  %v213 = vpop.f32.mrf.mxu0
  %214 = vmatprep.mubr.f32.mxu0 %v41
  %215 = vmatmul.mubr.f32.gmra.mxu0 %v40
  %v216 = vpop.f32.mrf.mxu0
  %v217 = vadd.f32 %v83, %v216
  %v218 = vpop.f32.mrf.mxu0
  %219 = vmatprep.mubr.f32.mxu0 %v43
  %220 = vmatmul.mubr.f32.gmra.mxu0 %v42
  %v221 = vpop.f32.mrf.mxu0
  %v222 = vadd.f32 %v83, %v221
  %v223 = vpop.f32.mrf.mxu0
  %224 = vmatprep.mubr.f32.mxu0 %v45
  %225 = vmatmul.mubr.f32.gmra.mxu0 %v44
  %v226 = vpop.f32.mrf.mxu0
  %v227 = vadd.f32 %v83, %v226
  %v228 = vpop.f32.mrf.mxu0
  %229 = vdwg.mxu0
  %v230 = vmax.f32 %v152, 0.0
  %v231 = vmax.f32 %v157, 0.0
  %v232 = vmax.f32 %v162, 0.0
  %v233 = vmax.f32 %v167, 0.0
  %v234 = vmax.f32 %v172, 0.0
  %v235 = vmax.f32 %v177, 0.0
  %v236 = vmax.f32 %v182, 0.0
  %v237 = vmax.f32 %v187, 0.0
  %v238 = vmax.f32 %v192, 0.0
  %v239 = vmax.f32 %v197, 0.0
  %v240 = vmax.f32 %v202, 0.0
  %v241 = vmax.f32 %v207, 0.0
  %v242 = vmax.f32 %v212, 0.0
  %v243 = vmax.f32 %v217, 0.0
  %v244 = vmax.f32 %v222, 0.0
  %v245 = vmax.f32 %v227, 0.0
  %vm246 = vcmask 261120
  %247 = vst.msk [vmem:[%s3] sm:$0xff] %vm246, %v230
  %248 = vst.msk [vmem:[%s3 + $0x8] sm:$0xff] %vm246, %v231
  %249 = vst.msk [vmem:[%s3 + $0x10] sm:$0xff] %vm246, %v232
  %250 = vst.msk [vmem:[%s3 + $0x18] sm:$0xff] %vm246, %v233
  %251 = vst.msk [vmem:[%s3 + $0x20] sm:$0xff] %vm246, %v234
  %252 = vst.msk [vmem:[%s3 + $0x28] sm:$0xff] %vm246, %v235
  %253 = vst.msk [vmem:[%s3 + $0x30] sm:$0xff] %vm246, %v236
  %254 = vst.msk [vmem:[%s3 + $0x38] sm:$0xff] %vm246, %v237
  %255 = vst.msk [vmem:[%s3 + $0x40] sm:$0xff] %vm246, %v238
  %256 = vst.msk [vmem:[%s3 + $0x48] sm:$0xff] %vm246, %v239
  %257 = vst.msk [vmem:[%s3 + $0x50] sm:$0xff] %vm246, %v240
  %258 = vst.msk [vmem:[%s3 + $0x58] sm:$0xff] %vm246, %v241
  %259 = vst.msk [vmem:[%s3 + $0x60] sm:$0xff] %vm246, %v242
  %260 = vst.msk [vmem:[%s3 + $0x68] sm:$0xff] %vm246, %v243
  %261 = vst.msk [vmem:[%s3 + $0x70] sm:$0xff] %vm246, %v244
  %262 = vst.msk [vmem:[%s3 + $0x78] sm:$0xff] %vm246, %v245
  // Predicated region
  $region14: #{attention_model_forward.3} parent=0 // pred_check
    _
  $region15: #{attention_model_forward.3} parent=0 // pred_check_branch
    %264 = sbr.rel (0) target = $region17
  $region16: #{attention_model_forward.3} parent=0 // pred_region
    _
  $region17: #{attention_model_forward.3} parent=0 // pred_fallthru
    _
  // Predicated region
  $region18: #{attention_model_forward.3} parent=0 // pred_check
    _
  $region19: #{attention_model_forward.3} parent=0 // pred_check_branch
    %266 = sbr.rel (0) target = $region21
  $region20: #{attention_model_forward.3} parent=0 // pred_region
    _
  $region21: #{attention_model_forward.3} parent=0 // pred_fallthru
    _

// kernel: attention_model_forward.4
$region0: #{attention_model_forward.4}
  #allocation0 [shape = 'u32[]', space=smem, size = 0x4, offset = 0x4, fixed_abs, tag = 'smem constant byte address 0x4 - core index']
  #allocation1 [shape = 'u32[144,128]{1,0:T(1,128)}', space=vmem, size = 0x12000, scoped, tag = 'internal scratch']
  %s0 = inlined_call_operand.vmem [shape: f32[24,512], index: 0, kind: input, shape index: {}]
  %s1 = inlined_call_operand.vmem [shape: f32[512,64], index: 1, kind: input, shape index: {}]
  %s2 = inlined_call_operand.vmem [shape: f32[1,64], index: 2, kind: input, shape index: {}]
  %s3 = inlined_call_operand.vmem [shape: f32[24,64], index: 3, kind: output, shape index: {}]
  %s4 = sld [smem:[#allocation0]]
  $region22: #{attention_model_forward.4} parent=0
    _
  %s6 = ssub.s32 1, %s4
  %s7 = scalar_select 0, %s6, %s4
  // Predicated region
  $region2: #{attention_model_forward.4} parent=0 // pred_check
    _
  $region3: #{attention_model_forward.4} parent=0 // pred_check_branch
    %9 = sbr.rel (0) target = $region5
  $region4: #{attention_model_forward.4} parent=0 // pred_region
    _
  $region5: #{attention_model_forward.4} parent=0 // pred_fallthru
    _
  // Predicated region
  $region6: #{attention_model_forward.4} parent=0 // pred_check
    _
  $region7: #{attention_model_forward.4} parent=0 // pred_check_branch
    %11 = sbr.rel (0) target = $region9
  $region8: #{attention_model_forward.4} parent=0 // pred_region
    _
  $region9: #{attention_model_forward.4} parent=0 // pred_fallthru
    _
  // Predicated region
  $region10: #{attention_model_forward.4} parent=0 // pred_check
    _
  $region11: #{attention_model_forward.4} parent=0 // pred_check_branch
    %13 = sbr.rel (0) target = $region13
  $region12: #{attention_model_forward.4} parent=0 // pred_region
    _
  $region13: #{attention_model_forward.4} parent=0 // pred_fallthru
    _
  %v14 = vld [vmem:[%s0] sm:$0xff]
  %v15 = vld [vmem:[%s0 + $0x8] sm:$0xff]
  %v16 = vld [vmem:[%s0 + $0x10] sm:$0xff]
  %v17 = vld [vmem:[%s0 + $0x18] sm:$0xff]
  %v18 = vld [vmem:[%s0 + $0x20] sm:$0xff]
  %v19 = vld [vmem:[%s0 + $0x28] sm:$0xff]
  %v20 = vld [vmem:[%s0 + $0x30] sm:$0xff]
  %v21 = vld [vmem:[%s0 + $0x38] sm:$0xff]
  %v22 = vld [vmem:[%s0 + $0x40] sm:$0xff]
  %v23 = vld [vmem:[%s0 + $0x48] sm:$0xff]
  %v24 = vld [vmem:[%s0 + $0x50] sm:$0xff]
  %v25 = vld [vmem:[%s0 + $0x58] sm:$0xff]
  %v26 = vld [vmem:[%s1] sm:$0xff]
  %v27 = vld [vmem:[%s1 + $0x8] sm:$0xff]
  %v28 = vld [vmem:[%s1 + $0x10] sm:$0xff]
  %v29 = vld [vmem:[%s1 + $0x18] sm:$0xff]
  %v30 = vld [vmem:[%s1 + $0x20] sm:$0xff]
  %v31 = vld [vmem:[%s1 + $0x28] sm:$0xff]
  %v32 = vld [vmem:[%s1 + $0x30] sm:$0xff]
  %v33 = vld [vmem:[%s1 + $0x38] sm:$0xff]
  %v34 = vld [vmem:[%s1 + $0x40] sm:$0xff]
  %v35 = vld [vmem:[%s1 + $0x48] sm:$0xff]
  %v36 = vld [vmem:[%s1 + $0x50] sm:$0xff]
  %v37 = vld [vmem:[%s1 + $0x58] sm:$0xff]
  %v38 = vld [vmem:[%s1 + $0x60] sm:$0xff]
  %v39 = vld [vmem:[%s1 + $0x68] sm:$0xff]
  %v40 = vld [vmem:[%s1 + $0x70] sm:$0xff]
  %v41 = vld [vmem:[%s1 + $0x78] sm:$0xff]
  %v42 = vld [vmem:[%s1 + $0x80] sm:$0xff]
  %v43 = vld [vmem:[%s1 + $0x88] sm:$0xff]
  %v44 = vld [vmem:[%s1 + $0x90] sm:$0xff]
  %v45 = vld [vmem:[%s1 + $0x98] sm:$0xff]
  %v46 = vld [vmem:[%s1 + $0xa0] sm:$0xff]
  %v47 = vld [vmem:[%s1 + $0xa8] sm:$0xff]
  %v48 = vld [vmem:[%s1 + $0xb0] sm:$0xff]
  %v49 = vld [vmem:[%s1 + $0xb8] sm:$0xff]
  %v50 = vld [vmem:[%s1 + $0xc0] sm:$0xff]
  %v51 = vld [vmem:[%s1 + $0xc8] sm:$0xff]
  %v52 = vld [vmem:[%s1 + $0xd0] sm:$0xff]
  %v53 = vld [vmem:[%s1 + $0xd8] sm:$0xff]
  %v54 = vld [vmem:[%s1 + $0xe0] sm:$0xff]
  %v55 = vld [vmem:[%s1 + $0xe8] sm:$0xff]
  %v56 = vld [vmem:[%s1 + $0xf0] sm:$0xff]
  %v57 = vld [vmem:[%s1 + $0xf8] sm:$0xff]
  %v58 = vld [vmem:[%s1 + $0x100] sm:$0xff]
  %v59 = vld [vmem:[%s1 + $0x108] sm:$0xff]
  %v60 = vld [vmem:[%s1 + $0x110] sm:$0xff]
  %v61 = vld [vmem:[%s1 + $0x118] sm:$0xff]
  %v62 = vld [vmem:[%s1 + $0x120] sm:$0xff]
  %v63 = vld [vmem:[%s1 + $0x128] sm:$0xff]
  %v64 = vld [vmem:[%s1 + $0x130] sm:$0xff]
  %v65 = vld [vmem:[%s1 + $0x138] sm:$0xff]
  %v66 = vld [vmem:[%s1 + $0x140] sm:$0xff]
  %v67 = vld [vmem:[%s1 + $0x148] sm:$0xff]
  %v68 = vld [vmem:[%s1 + $0x150] sm:$0xff]
  %v69 = vld [vmem:[%s1 + $0x158] sm:$0xff]
  %v70 = vld [vmem:[%s1 + $0x160] sm:$0xff]
  %v71 = vld [vmem:[%s1 + $0x168] sm:$0xff]
  %v72 = vld [vmem:[%s1 + $0x170] sm:$0xff]
  %v73 = vld [vmem:[%s1 + $0x178] sm:$0xff]
  %v74 = vld [vmem:[%s1 + $0x180] sm:$0xff]
  %v75 = vld [vmem:[%s1 + $0x188] sm:$0xff]
  %v76 = vld [vmem:[%s1 + $0x190] sm:$0xff]
  %v77 = vld [vmem:[%s1 + $0x198] sm:$0xff]
  %v78 = vld [vmem:[%s1 + $0x1a0] sm:$0xff]
  %v79 = vld [vmem:[%s1 + $0x1a8] sm:$0xff]
  %v80 = vld [vmem:[%s1 + $0x1b0] sm:$0xff]
  %v81 = vld [vmem:[%s1 + $0x1b8] sm:$0xff]
  %v82 = vld [vmem:[%s1 + $0x1c0] sm:$0xff]
  %v83 = vld [vmem:[%s1 + $0x1c8] sm:$0xff]
  %v84 = vld [vmem:[%s1 + $0x1d0] sm:$0xff]
  %v85 = vld [vmem:[%s1 + $0x1d8] sm:$0xff]
  %v86 = vld [vmem:[%s1 + $0x1e0] sm:$0xff]
  %v87 = vld [vmem:[%s1 + $0x1e8] sm:$0xff]
  %v88 = vld [vmem:[%s1 + $0x1f0] sm:$0xff]
  %v89 = vld [vmem:[%s1 + $0x1f8] sm:$0xff]
  %v90 = vld [vmem:[%s2] sm:$0x1]
  %v92 = vlaneseq
  %v93 = vshrl.u32 %v92, 7
  %v94 = vsub.s32 0, %v93
  %v95 = vrot.slane %v90, %v94
  %97 = vmatprep.subr.mxu0 0.0
  %98 = vmatpush1.msra.mxu0 %v41
  %99 = vmatprep.subr.mxu0 0.0
  %100 = vmatpush1.msra.mxu0 %v40
  %101 = vmatprep.subr.mxu0 0.0
  %102 = vmatpush1.msra.mxu0 %v39
  %103 = vmatprep.subr.mxu0 0.0
  %104 = vmatpush1.msra.mxu0 %v38
  %105 = vmatprep.subr.mxu0 0.0
  %106 = vmatpush1.msra.mxu0 %v37
  %107 = vmatprep.subr.mxu0 0.0
  %108 = vmatpush1.msra.mxu0 %v36
  %109 = vmatprep.subr.mxu0 0.0
  %110 = vmatpush1.msra.mxu0 %v35
  %111 = vmatprep.subr.mxu0 0.0
  %112 = vmatpush1.msra.mxu0 %v34
  %113 = vmatprep.subr.mxu0 0.0
  %114 = vmatpush1.msra.mxu0 %v33
  %115 = vmatprep.subr.mxu0 0.0
  %116 = vmatpush1.msra.mxu0 %v32
  %117 = vmatprep.subr.mxu0 0.0
  %118 = vmatpush1.msra.mxu0 %v31
  %119 = vmatprep.subr.mxu0 0.0
  %120 = vmatpush1.msra.mxu0 %v30
  %121 = vmatprep.subr.mxu0 0.0
  %122 = vmatpush1.msra.mxu0 %v29
  %123 = vmatprep.subr.mxu0 0.0
  %124 = vmatpush1.msra.mxu0 %v28
  %125 = vmatprep.subr.mxu0 0.0
  %126 = vmatpush1.msra.mxu0 %v27
  %127 = vmatprep.subr.mxu0 0.0
  %128 = vmatpush1.msra.mxu0 %v26
  %129 = vmatprep.subr.mxu0 0.0
  %130 = vmatpush2.msra.mxu0 %v57
  %131 = vmatprep.subr.mxu0 0.0
  %132 = vmatpush2.msra.mxu0 %v56
  %133 = vmatprep.subr.mxu0 0.0
  %134 = vmatpush2.msra.mxu0 %v55
  %135 = vmatprep.subr.mxu0 0.0
  %136 = vmatpush2.msra.mxu0 %v54
  %137 = vmatprep.subr.mxu0 0.0
  %138 = vmatpush2.msra.mxu0 %v53
  %139 = vmatprep.subr.mxu0 0.0
  %140 = vmatpush2.msra.mxu0 %v52
  %141 = vmatprep.subr.mxu0 0.0
  %142 = vmatpush2.msra.mxu0 %v51
  %143 = vmatprep.subr.mxu0 0.0
  %144 = vmatpush2.msra.mxu0 %v50
  %145 = vmatprep.subr.mxu0 0.0
  %146 = vmatpush2.msra.mxu0 %v49
  %147 = vmatprep.subr.mxu0 0.0
  %148 = vmatpush2.msra.mxu0 %v48
  %149 = vmatprep.subr.mxu0 0.0
  %150 = vmatpush2.msra.mxu0 %v47
  %151 = vmatprep.subr.mxu0 0.0
  %152 = vmatpush2.msra.mxu0 %v46
  %153 = vmatprep.subr.mxu0 0.0
  %154 = vmatpush2.msra.mxu0 %v45
  %155 = vmatprep.subr.mxu0 0.0
  %156 = vmatpush2.msra.mxu0 %v44
  %157 = vmatprep.subr.mxu0 0.0
  %158 = vmatpush2.msra.mxu0 %v43
  %159 = vmatprep.subr.mxu0 0.0
  %160 = vmatpush2.msra.mxu0 %v42
  %161 = vmatprep.mubr.f32.mxu0 %v15
  %162 = vmatmul.mubr.f32.gmra.mxu0 %v14
  %v163 = vpop.f32.mrf.mxu0
  %v164 = vadd.f32 %v95, %v163
  %v165 = vpop.f32.mrf.mxu0
  %166 = vmatprep.mubr.f32.mxu0 %v19
  %167 = vmatmul.mubr.f32.gmra.mxu0 %v18
  %v168 = vpop.f32.mrf.mxu0
  %v169 = vadd.f32 %v95, %v168
  %v170 = vpop.f32.mrf.mxu0
  %171 = vmatprep.mubr.f32.mxu0 %v23
  %172 = vmatmul.mubr.f32.gmra.mxu0 %v22
  %v173 = vpop.f32.mrf.mxu0
  %v174 = vadd.f32 %v95, %v173
  %v175 = vpop.f32.mrf.mxu0
  %176 = vdwg.mxu0
  %177 = vmatprep.subr.mxu0 0.0
  %178 = vmatpush1.msra.mxu0 %v73
  %179 = vmatprep.subr.mxu0 0.0
  %180 = vmatpush1.msra.mxu0 %v72
  %181 = vmatprep.subr.mxu0 0.0
  %182 = vmatpush1.msra.mxu0 %v71
  %183 = vmatprep.subr.mxu0 0.0
  %184 = vmatpush1.msra.mxu0 %v70
  %185 = vmatprep.subr.mxu0 0.0
  %186 = vmatpush1.msra.mxu0 %v69
  %187 = vmatprep.subr.mxu0 0.0
  %188 = vmatpush1.msra.mxu0 %v68
  %189 = vmatprep.subr.mxu0 0.0
  %190 = vmatpush1.msra.mxu0 %v67
  %191 = vmatprep.subr.mxu0 0.0
  %192 = vmatpush1.msra.mxu0 %v66
  %193 = vmatprep.subr.mxu0 0.0
  %194 = vmatpush1.msra.mxu0 %v65
  %195 = vmatprep.subr.mxu0 0.0
  %196 = vmatpush1.msra.mxu0 %v64
  %197 = vmatprep.subr.mxu0 0.0
  %198 = vmatpush1.msra.mxu0 %v63
  %199 = vmatprep.subr.mxu0 0.0
  %200 = vmatpush1.msra.mxu0 %v62
  %201 = vmatprep.subr.mxu0 0.0
  %202 = vmatpush1.msra.mxu0 %v61
  %203 = vmatprep.subr.mxu0 0.0
  %204 = vmatpush1.msra.mxu0 %v60
  %205 = vmatprep.subr.mxu0 0.0
  %206 = vmatpush1.msra.mxu0 %v59
  %207 = vmatprep.subr.mxu0 0.0
  %208 = vmatpush1.msra.mxu0 %v58
  %209 = vmatprep.subr.mxu0 0.0
  %210 = vmatpush2.msra.mxu0 %v89
  %211 = vmatprep.subr.mxu0 0.0
  %212 = vmatpush2.msra.mxu0 %v88
  %213 = vmatprep.subr.mxu0 0.0
  %214 = vmatpush2.msra.mxu0 %v87
  %215 = vmatprep.subr.mxu0 0.0
  %216 = vmatpush2.msra.mxu0 %v86
  %217 = vmatprep.subr.mxu0 0.0
  %218 = vmatpush2.msra.mxu0 %v85
  %219 = vmatprep.subr.mxu0 0.0
  %220 = vmatpush2.msra.mxu0 %v84
  %221 = vmatprep.subr.mxu0 0.0
  %222 = vmatpush2.msra.mxu0 %v83
  %223 = vmatprep.subr.mxu0 0.0
  %224 = vmatpush2.msra.mxu0 %v82
  %225 = vmatprep.subr.mxu0 0.0
  %226 = vmatpush2.msra.mxu0 %v81
  %227 = vmatprep.subr.mxu0 0.0
  %228 = vmatpush2.msra.mxu0 %v80
  %229 = vmatprep.subr.mxu0 0.0
  %230 = vmatpush2.msra.mxu0 %v79
  %231 = vmatprep.subr.mxu0 0.0
  %232 = vmatpush2.msra.mxu0 %v78
  %233 = vmatprep.subr.mxu0 0.0
  %234 = vmatpush2.msra.mxu0 %v77
  %235 = vmatprep.subr.mxu0 0.0
  %236 = vmatpush2.msra.mxu0 %v76
  %237 = vmatprep.subr.mxu0 0.0
  %238 = vmatpush2.msra.mxu0 %v75
  %239 = vmatprep.subr.mxu0 0.0
  %240 = vmatpush2.msra.mxu0 %v74
  %241 = vmatprep.mubr.f32.mxu0 %v17
  %242 = vmatmul.mubr.f32.gmra.mxu0 %v16
  %v243 = vpop.f32.mrf.mxu0
  %v244 = vadd.f32 %v164, %v243
  %v245 = vpop.f32.mrf.mxu0
  %246 = vmatprep.mubr.f32.mxu0 %v21
  %247 = vmatmul.mubr.f32.gmra.mxu0 %v20
  %v248 = vpop.f32.mrf.mxu0
  %v249 = vadd.f32 %v169, %v248
  %v250 = vpop.f32.mrf.mxu0
  %251 = vmatprep.mubr.f32.mxu0 %v25
  %252 = vmatmul.mubr.f32.gmra.mxu0 %v24
  %v253 = vpop.f32.mrf.mxu0
  %v254 = vadd.f32 %v174, %v253
  %v255 = vpop.f32.mrf.mxu0
  %256 = vdwg.mxu0
  %v257 = vmax.f32 %v244, 0.0
  %v258 = vmax.f32 %v249, 0.0
  %v259 = vmax.f32 %v254, 0.0
  %vm260 = vcmask 523264
  %261 = vst.msk [vmem:[%s3] sm:$0xff] %vm260, %v257
  %262 = vst.msk [vmem:[%s3 + $0x8] sm:$0xff] %vm260, %v258
  %263 = vst.msk [vmem:[%s3 + $0x10] sm:$0xff] %vm260, %v259
  // Predicated region
  $region14: #{attention_model_forward.4} parent=0 // pred_check
    _
  $region15: #{attention_model_forward.4} parent=0 // pred_check_branch
    %265 = sbr.rel (0) target = $region17
  $region16: #{attention_model_forward.4} parent=0 // pred_region
    _
  $region17: #{attention_model_forward.4} parent=0 // pred_fallthru
    _
  // Predicated region
  $region18: #{attention_model_forward.4} parent=0 // pred_check
    _
  $region19: #{attention_model_forward.4} parent=0 // pred_check_branch
    %267 = sbr.rel (0) target = $region21
  $region20: #{attention_model_forward.4} parent=0 // pred_region
    _
  $region21: #{attention_model_forward.4} parent=0 // pred_fallthru
    _

// kernel: attention_model_forward.5
$region0: #{attention_model_forward.5}
  #allocation0 [shape = 'u32[]', space=smem, size = 0x4, offset = 0x4, fixed_abs, tag = 'smem constant byte address 0x4 - core index']
  #allocation1 [shape = 'u32[144,128]{1,0:T(1,128)}', space=vmem, size = 0x12000, scoped, tag = 'internal scratch']
  %s0 = inlined_call_operand.vmem [shape: f32[8,576], index: 0, kind: input, shape index: {}]
  %s1 = inlined_call_operand.vmem [shape: f32[576,64], index: 1, kind: input, shape index: {}]
  %s2 = inlined_call_operand.vmem [shape: f32[1,64], index: 2, kind: input, shape index: {}]
  %s3 = inlined_call_operand.vmem [shape: f32[64,128], index: 3, kind: input, shape index: {}]
  %s4 = inlined_call_operand.vmem [shape: f32[1,128], index: 4, kind: input, shape index: {}]
  %s5 = inlined_call_operand.vmem [shape: f32[128,128], index: 5, kind: input, shape index: {}]
  %s6 = inlined_call_operand.vmem [shape: f32[1,128], index: 6, kind: input, shape index: {}]
  %s7 = inlined_call_operand.vmem [shape: f32[8,128], index: 7, kind: output, shape index: {}]
  %s8 = sld [smem:[#allocation0]]
  $region38: #{attention_model_forward.5} parent=0
    _
  %s10 = ssub.s32 1, %s8
  %s11 = scalar_select 0, %s10, %s8
  // Predicated region
  $region2: #{attention_model_forward.5} parent=0 // pred_check
    _
  $region3: #{attention_model_forward.5} parent=0 // pred_check_branch
    %13 = sbr.rel (0) target = $region5
  $region4: #{attention_model_forward.5} parent=0 // pred_region
    _
  $region5: #{attention_model_forward.5} parent=0 // pred_fallthru
    _
  // Predicated region
  $region6: #{attention_model_forward.5} parent=0 // pred_check
    _
  $region7: #{attention_model_forward.5} parent=0 // pred_check_branch
    %15 = sbr.rel (0) target = $region9
  $region8: #{attention_model_forward.5} parent=0 // pred_region
    _
  $region9: #{attention_model_forward.5} parent=0 // pred_fallthru
    _
  // Predicated region
  $region10: #{attention_model_forward.5} parent=0 // pred_check
    _
  $region11: #{attention_model_forward.5} parent=0 // pred_check_branch
    %17 = sbr.rel (0) target = $region13
  $region12: #{attention_model_forward.5} parent=0 // pred_region
    _
  $region13: #{attention_model_forward.5} parent=0 // pred_fallthru
    _
  // Predicated region
  $region14: #{attention_model_forward.5} parent=0 // pred_check
    _
  $region15: #{attention_model_forward.5} parent=0 // pred_check_branch
    %19 = sbr.rel (0) target = $region17
  $region16: #{attention_model_forward.5} parent=0 // pred_region
    _
  $region17: #{attention_model_forward.5} parent=0 // pred_fallthru
    _
  // Predicated region
  $region18: #{attention_model_forward.5} parent=0 // pred_check
    _
  $region19: #{attention_model_forward.5} parent=0 // pred_check_branch
    %21 = sbr.rel (0) target = $region21
  $region20: #{attention_model_forward.5} parent=0 // pred_region
    _
  $region21: #{attention_model_forward.5} parent=0 // pred_fallthru
    _
  // Predicated region
  $region22: #{attention_model_forward.5} parent=0 // pred_check
    _
  $region23: #{attention_model_forward.5} parent=0 // pred_check_branch
    %23 = sbr.rel (0) target = $region25
  $region24: #{attention_model_forward.5} parent=0 // pred_region
    _
  $region25: #{attention_model_forward.5} parent=0 // pred_fallthru
    _
  // Predicated region
  $region26: #{attention_model_forward.5} parent=0 // pred_check
    _
  $region27: #{attention_model_forward.5} parent=0 // pred_check_branch
    %25 = sbr.rel (0) target = $region29
  $region28: #{attention_model_forward.5} parent=0 // pred_region
    _
  $region29: #{attention_model_forward.5} parent=0 // pred_fallthru
    _
  %v26 = vld [vmem:[%s0] sm:$0xff]
  %v27 = vld [vmem:[%s0 + $0x8] sm:$0xff]
  %v28 = vld [vmem:[%s0 + $0x10] sm:$0xff]
  %v29 = vld [vmem:[%s0 + $0x18] sm:$0xff]
  %v30 = vld [vmem:[%s0 + $0x20] sm:$0xff]
  %v31 = vld [vmem:[%s1] sm:$0xff]
  %v32 = vld [vmem:[%s1 + $0x8] sm:$0xff]
  %v33 = vld [vmem:[%s1 + $0x10] sm:$0xff]
  %v34 = vld [vmem:[%s1 + $0x18] sm:$0xff]
  %v35 = vld [vmem:[%s1 + $0x20] sm:$0xff]
  %v36 = vld [vmem:[%s1 + $0x28] sm:$0xff]
  %v37 = vld [vmem:[%s1 + $0x30] sm:$0xff]
  %v38 = vld [vmem:[%s1 + $0x38] sm:$0xff]
  %v39 = vld [vmem:[%s1 + $0x40] sm:$0xff]
  %v40 = vld [vmem:[%s1 + $0x48] sm:$0xff]
  %v41 = vld [vmem:[%s1 + $0x50] sm:$0xff]
  %v42 = vld [vmem:[%s1 + $0x58] sm:$0xff]
  %v43 = vld [vmem:[%s1 + $0x60] sm:$0xff]
  %v44 = vld [vmem:[%s1 + $0x68] sm:$0xff]
  %v45 = vld [vmem:[%s1 + $0x70] sm:$0xff]
  %v46 = vld [vmem:[%s1 + $0x78] sm:$0xff]
  %v47 = vld [vmem:[%s1 + $0x80] sm:$0xff]
  %v48 = vld [vmem:[%s1 + $0x88] sm:$0xff]
  %v49 = vld [vmem:[%s1 + $0x90] sm:$0xff]
  %v50 = vld [vmem:[%s1 + $0x98] sm:$0xff]
  %v51 = vld [vmem:[%s1 + $0xa0] sm:$0xff]
  %v52 = vld [vmem:[%s1 + $0xa8] sm:$0xff]
  %v53 = vld [vmem:[%s1 + $0xb0] sm:$0xff]
  %v54 = vld [vmem:[%s1 + $0xb8] sm:$0xff]
  %v55 = vld [vmem:[%s1 + $0xc0] sm:$0xff]
  %v56 = vld [vmem:[%s1 + $0xc8] sm:$0xff]
  %v57 = vld [vmem:[%s1 + $0xd0] sm:$0xff]
  %v58 = vld [vmem:[%s1 + $0xd8] sm:$0xff]
  %v59 = vld [vmem:[%s1 + $0xe0] sm:$0xff]
  %v60 = vld [vmem:[%s1 + $0xe8] sm:$0xff]
  %v61 = vld [vmem:[%s1 + $0xf0] sm:$0xff]
  %v62 = vld [vmem:[%s1 + $0xf8] sm:$0xff]
  %v63 = vld [vmem:[%s1 + $0x100] sm:$0xff]
  %v64 = vld [vmem:[%s1 + $0x108] sm:$0xff]
  %v65 = vld [vmem:[%s1 + $0x110] sm:$0xff]
  %v66 = vld [vmem:[%s1 + $0x118] sm:$0xff]
  %v67 = vld [vmem:[%s1 + $0x120] sm:$0xff]
  %v68 = vld [vmem:[%s1 + $0x128] sm:$0xff]
  %v69 = vld [vmem:[%s1 + $0x130] sm:$0xff]
  %v70 = vld [vmem:[%s1 + $0x138] sm:$0xff]
  %v71 = vld [vmem:[%s1 + $0x140] sm:$0xff]
  %v72 = vld [vmem:[%s1 + $0x148] sm:$0xff]
  %v73 = vld [vmem:[%s1 + $0x150] sm:$0xff]
  %v74 = vld [vmem:[%s1 + $0x158] sm:$0xff]
  %v75 = vld [vmem:[%s1 + $0x160] sm:$0xff]
  %v76 = vld [vmem:[%s1 + $0x168] sm:$0xff]
  %v77 = vld [vmem:[%s1 + $0x170] sm:$0xff]
  %v78 = vld [vmem:[%s1 + $0x178] sm:$0xff]
  %v79 = vld [vmem:[%s1 + $0x180] sm:$0xff]
  %v80 = vld [vmem:[%s1 + $0x188] sm:$0xff]
  %v81 = vld [vmem:[%s1 + $0x190] sm:$0xff]
  %v82 = vld [vmem:[%s1 + $0x198] sm:$0xff]
  %v83 = vld [vmem:[%s1 + $0x1a0] sm:$0xff]
  %v84 = vld [vmem:[%s1 + $0x1a8] sm:$0xff]
  %v85 = vld [vmem:[%s1 + $0x1b0] sm:$0xff]
  %v86 = vld [vmem:[%s1 + $0x1b8] sm:$0xff]
  %v87 = vld [vmem:[%s1 + $0x1c0] sm:$0xff]
  %v88 = vld [vmem:[%s1 + $0x1c8] sm:$0xff]
  %v89 = vld [vmem:[%s1 + $0x1d0] sm:$0xff]
  %v90 = vld [vmem:[%s1 + $0x1d8] sm:$0xff]
  %v91 = vld [vmem:[%s1 + $0x1e0] sm:$0xff]
  %v92 = vld [vmem:[%s1 + $0x1e8] sm:$0xff]
  %v93 = vld [vmem:[%s1 + $0x1f0] sm:$0xff]
  %v94 = vld [vmem:[%s1 + $0x1f8] sm:$0xff]
  %v95 = vld [vmem:[%s1 + $0x200] sm:$0xff]
  %v96 = vld [vmem:[%s1 + $0x208] sm:$0xff]
  %v97 = vld [vmem:[%s1 + $0x210] sm:$0xff]
  %v98 = vld [vmem:[%s1 + $0x218] sm:$0xff]
  %v99 = vld [vmem:[%s1 + $0x220] sm:$0xff]
  %v100 = vld [vmem:[%s1 + $0x228] sm:$0xff]
  %v101 = vld [vmem:[%s1 + $0x230] sm:$0xff]
  %v102 = vld [vmem:[%s1 + $0x238] sm:$0xff]
  %v103 = vld [vmem:[%s2] sm:$0x1]
  %v105 = vlaneseq
  %v106 = vshrl.u32 %v105, 7
  %v107 = vsub.s32 0, %v106
  %v108 = vrot.slane %v103, %v107
  %vm110 = vcmask 523264
  %v112 = vsel %vm110, %v30, 0
  %114 = vmatprep.subr.mxu0 0.0
  %115 = vmatpush1.msra.mxu0 %v46
  %116 = vmatprep.subr.mxu0 0.0
  %117 = vmatpush1.msra.mxu0 %v45
  %118 = vmatprep.subr.mxu0 0.0
  %119 = vmatpush1.msra.mxu0 %v44
  %120 = vmatprep.subr.mxu0 0.0
  %121 = vmatpush1.msra.mxu0 %v43
  %122 = vmatprep.subr.mxu0 0.0
  %123 = vmatpush1.msra.mxu0 %v42
  %124 = vmatprep.subr.mxu0 0.0
  %125 = vmatpush1.msra.mxu0 %v41
  %126 = vmatprep.subr.mxu0 0.0
  %127 = vmatpush1.msra.mxu0 %v40
  %128 = vmatprep.subr.mxu0 0.0
  %129 = vmatpush1.msra.mxu0 %v39
  %130 = vmatprep.subr.mxu0 0.0
  %131 = vmatpush1.msra.mxu0 %v38
  %132 = vmatprep.subr.mxu0 0.0
  %133 = vmatpush1.msra.mxu0 %v37
  %134 = vmatprep.subr.mxu0 0.0
  %135 = vmatpush1.msra.mxu0 %v36
  %136 = vmatprep.subr.mxu0 0.0
  %137 = vmatpush1.msra.mxu0 %v35
  %138 = vmatprep.subr.mxu0 0.0
  %139 = vmatpush1.msra.mxu0 %v34
  %140 = vmatprep.subr.mxu0 0.0
  %141 = vmatpush1.msra.mxu0 %v33
  %142 = vmatprep.subr.mxu0 0.0
  %143 = vmatpush1.msra.mxu0 %v32
  %144 = vmatprep.subr.mxu0 0.0
  %145 = vmatpush1.msra.mxu0 %v31
  %146 = vmatprep.subr.mxu0 0.0
  %147 = vmatpush2.msra.mxu0 %v62
  %148 = vmatprep.subr.mxu0 0.0
  %149 = vmatpush2.msra.mxu0 %v61
  %150 = vmatprep.subr.mxu0 0.0
  %151 = vmatpush2.msra.mxu0 %v60
  %152 = vmatprep.subr.mxu0 0.0
  %153 = vmatpush2.msra.mxu0 %v59
  %154 = vmatprep.subr.mxu0 0.0
  %155 = vmatpush2.msra.mxu0 %v58
  %156 = vmatprep.subr.mxu0 0.0
  %157 = vmatpush2.msra.mxu0 %v57
  %158 = vmatprep.subr.mxu0 0.0
  %159 = vmatpush2.msra.mxu0 %v56
  %160 = vmatprep.subr.mxu0 0.0
  %161 = vmatpush2.msra.mxu0 %v55
  %162 = vmatprep.subr.mxu0 0.0
  %163 = vmatpush2.msra.mxu0 %v54
  %164 = vmatprep.subr.mxu0 0.0
  %165 = vmatpush2.msra.mxu0 %v53
  %166 = vmatprep.subr.mxu0 0.0
  %167 = vmatpush2.msra.mxu0 %v52
  %168 = vmatprep.subr.mxu0 0.0
  %169 = vmatpush2.msra.mxu0 %v51
  %170 = vmatprep.subr.mxu0 0.0
  %171 = vmatpush2.msra.mxu0 %v50
  %172 = vmatprep.subr.mxu0 0.0
  %173 = vmatpush2.msra.mxu0 %v49
  %174 = vmatprep.subr.mxu0 0.0
  %175 = vmatpush2.msra.mxu0 %v48
  %176 = vmatprep.subr.mxu0 0.0
  %177 = vmatpush2.msra.mxu0 %v47
  %178 = vmatprep.mubr.f32.mxu0 %v27
  %179 = vmatmul.mubr.f32.gmra.mxu0 %v26
  %v180 = vpop.f32.mrf.mxu0
  %v181 = vadd.f32 %v108, %v180
  %v182 = vpop.f32.mrf.mxu0
  %183 = vdwg.mxu0
  %184 = vmatprep.subr.mxu0 0.0
  %185 = vmatpush1.msra.mxu0 %v78
  %186 = vmatprep.subr.mxu0 0.0
  %187 = vmatpush1.msra.mxu0 %v77
  %188 = vmatprep.subr.mxu0 0.0
  %189 = vmatpush1.msra.mxu0 %v76
  %190 = vmatprep.subr.mxu0 0.0
  %191 = vmatpush1.msra.mxu0 %v75
  %192 = vmatprep.subr.mxu0 0.0
  %193 = vmatpush1.msra.mxu0 %v74
  %194 = vmatprep.subr.mxu0 0.0
  %195 = vmatpush1.msra.mxu0 %v73
  %196 = vmatprep.subr.mxu0 0.0
  %197 = vmatpush1.msra.mxu0 %v72
  %198 = vmatprep.subr.mxu0 0.0
  %199 = vmatpush1.msra.mxu0 %v71
  %200 = vmatprep.subr.mxu0 0.0
  %201 = vmatpush1.msra.mxu0 %v70
  %202 = vmatprep.subr.mxu0 0.0
  %203 = vmatpush1.msra.mxu0 %v69
  %204 = vmatprep.subr.mxu0 0.0
  %205 = vmatpush1.msra.mxu0 %v68
  %206 = vmatprep.subr.mxu0 0.0
  %207 = vmatpush1.msra.mxu0 %v67
  %208 = vmatprep.subr.mxu0 0.0
  %209 = vmatpush1.msra.mxu0 %v66
  %210 = vmatprep.subr.mxu0 0.0
  %211 = vmatpush1.msra.mxu0 %v65
  %212 = vmatprep.subr.mxu0 0.0
  %213 = vmatpush1.msra.mxu0 %v64
  %214 = vmatprep.subr.mxu0 0.0
  %215 = vmatpush1.msra.mxu0 %v63
  %216 = vmatprep.subr.mxu0 0.0
  %217 = vmatpush2.msra.mxu0 %v94
  %218 = vmatprep.subr.mxu0 0.0
  %219 = vmatpush2.msra.mxu0 %v93
  %220 = vmatprep.subr.mxu0 0.0
  %221 = vmatpush2.msra.mxu0 %v92
  %222 = vmatprep.subr.mxu0 0.0
  %223 = vmatpush2.msra.mxu0 %v91
  %224 = vmatprep.subr.mxu0 0.0
  %225 = vmatpush2.msra.mxu0 %v90
  %226 = vmatprep.subr.mxu0 0.0
  %227 = vmatpush2.msra.mxu0 %v89
  %228 = vmatprep.subr.mxu0 0.0
  %229 = vmatpush2.msra.mxu0 %v88
  %230 = vmatprep.subr.mxu0 0.0
  %231 = vmatpush2.msra.mxu0 %v87
  %232 = vmatprep.subr.mxu0 0.0
  %233 = vmatpush2.msra.mxu0 %v86
  %234 = vmatprep.subr.mxu0 0.0
  %235 = vmatpush2.msra.mxu0 %v85
  %236 = vmatprep.subr.mxu0 0.0
  %237 = vmatpush2.msra.mxu0 %v84
  %238 = vmatprep.subr.mxu0 0.0
  %239 = vmatpush2.msra.mxu0 %v83
  %240 = vmatprep.subr.mxu0 0.0
  %241 = vmatpush2.msra.mxu0 %v82
  %242 = vmatprep.subr.mxu0 0.0
  %243 = vmatpush2.msra.mxu0 %v81
  %244 = vmatprep.subr.mxu0 0.0
  %245 = vmatpush2.msra.mxu0 %v80
  %246 = vmatprep.subr.mxu0 0.0
  %247 = vmatpush2.msra.mxu0 %v79
  %248 = vmatprep.mubr.f32.mxu0 %v29
  %249 = vmatmul.mubr.f32.gmra.mxu0 %v28
  %v250 = vpop.f32.mrf.mxu0
  %v251 = vadd.f32 %v181, %v250
  %v252 = vpop.f32.mrf.mxu0
  %253 = vdwg.mxu0
  %254 = vmatprep.subr.mxu0 0.0
  %255 = vmatpush1.msra.mxu0 0.0
  %256 = vmatprep.subr.mxu0 0.0
  %257 = vmatpush1.msra.mxu0 0.0
  %258 = vmatprep.subr.mxu0 0.0
  %259 = vmatpush1.msra.mxu0 0.0
  %260 = vmatprep.subr.mxu0 0.0
  %261 = vmatpush1.msra.mxu0 0.0
  %262 = vmatprep.subr.mxu0 0.0
  %263 = vmatpush1.msra.mxu0 0.0
  %264 = vmatprep.subr.mxu0 0.0
  %265 = vmatpush1.msra.mxu0 0.0
  %266 = vmatprep.subr.mxu0 0.0
  %267 = vmatpush1.msra.mxu0 0.0
  %268 = vmatprep.subr.mxu0 0.0
  %269 = vmatpush1.msra.mxu0 0.0
  %270 = vmatprep.subr.mxu0 0.0
  %271 = vmatpush1.msra.mxu0 %v102
  %272 = vmatprep.subr.mxu0 0.0
  %273 = vmatpush1.msra.mxu0 %v101
  %274 = vmatprep.subr.mxu0 0.0
  %275 = vmatpush1.msra.mxu0 %v100
  %276 = vmatprep.subr.mxu0 0.0
  %277 = vmatpush1.msra.mxu0 %v99
  %278 = vmatprep.subr.mxu0 0.0
  %279 = vmatpush1.msra.mxu0 %v98
  %280 = vmatprep.subr.mxu0 0.0
  %281 = vmatpush1.msra.mxu0 %v97
  %282 = vmatprep.subr.mxu0 0.0
  %283 = vmatpush1.msra.mxu0 %v96
  %284 = vmatprep.subr.mxu0 0.0
  %285 = vmatpush1.msra.mxu0 %v95
  %286 = vmatprep.subr.mxu0 0.0
  %287 = vmatpush2.msra.mxu0 0.0
  %288 = vmatprep.subr.mxu0 0.0
  %289 = vmatpush2.msra.mxu0 0.0
  %290 = vmatprep.subr.mxu0 0.0
  %291 = vmatpush2.msra.mxu0 0.0
  %292 = vmatprep.subr.mxu0 0.0
  %293 = vmatpush2.msra.mxu0 0.0
  %294 = vmatprep.subr.mxu0 0.0
  %295 = vmatpush2.msra.mxu0 0.0
  %296 = vmatprep.subr.mxu0 0.0
  %297 = vmatpush2.msra.mxu0 0.0
  %298 = vmatprep.subr.mxu0 0.0
  %299 = vmatpush2.msra.mxu0 0.0
  %300 = vmatprep.subr.mxu0 0.0
  %301 = vmatpush2.msra.mxu0 0.0
  %302 = vmatprep.subr.mxu0 0.0
  %303 = vmatpush2.msra.mxu0 0.0
  %304 = vmatprep.subr.mxu0 0.0
  %305 = vmatpush2.msra.mxu0 0.0
  %306 = vmatprep.subr.mxu0 0.0
  %307 = vmatpush2.msra.mxu0 0.0
  %308 = vmatprep.subr.mxu0 0.0
  %309 = vmatpush2.msra.mxu0 0.0
  %310 = vmatprep.subr.mxu0 0.0
  %311 = vmatpush2.msra.mxu0 0.0
  %312 = vmatprep.subr.mxu0 0.0
  %313 = vmatpush2.msra.mxu0 0.0
  %314 = vmatprep.subr.mxu0 0.0
  %315 = vmatpush2.msra.mxu0 0.0
  %316 = vmatprep.subr.mxu0 0.0
  %317 = vmatpush2.msra.mxu0 0.0
  %318 = vmatprep.mubr.f32.mxu0 0.0
  %319 = vmatmul.mubr.f32.gmra.mxu0 %v112
  %v320 = vpop.f32.mrf.mxu0
  %v321 = vadd.f32 %v251, %v320
  %v322 = vpop.f32.mrf.mxu0
  %323 = vdwg.mxu0
  %v324 = vmax.f32 %v321, 0.0
  %v325 = vld [vmem:[%s3] sm:$0xff]
  %v326 = vld [vmem:[%s3 + $0x8] sm:$0xff]
  %v327 = vld [vmem:[%s3 + $0x10] sm:$0xff]
  %v328 = vld [vmem:[%s3 + $0x18] sm:$0xff]
  %v329 = vld [vmem:[%s3 + $0x20] sm:$0xff]
  %v330 = vld [vmem:[%s3 + $0x28] sm:$0xff]
  %v331 = vld [vmem:[%s3 + $0x30] sm:$0xff]
  %v332 = vld [vmem:[%s3 + $0x38] sm:$0xff]
  %v333 = vld [vmem:[%s4] sm:$0x1]
  %v335 = vlaneseq
  %v336 = vshrl.u32 %v335, 7
  %v337 = vsub.s32 0, %v336
  %v338 = vrot.slane %v333, %v337
  %v341 = vsel %vm110, %v324, 0
  %343 = vmatprep.subr.mxu0 0.0
  %344 = vmatpush1.msra.mxu0 0.0
  %345 = vmatprep.subr.mxu0 0.0
  %346 = vmatpush1.msra.mxu0 0.0
  %347 = vmatprep.subr.mxu0 0.0
  %348 = vmatpush1.msra.mxu0 0.0
  %349 = vmatprep.subr.mxu0 0.0
  %350 = vmatpush1.msra.mxu0 0.0
  %351 = vmatprep.subr.mxu0 0.0
  %352 = vmatpush1.msra.mxu0 0.0
  %353 = vmatprep.subr.mxu0 0.0
  %354 = vmatpush1.msra.mxu0 0.0
  %355 = vmatprep.subr.mxu0 0.0
  %356 = vmatpush1.msra.mxu0 0.0
  %357 = vmatprep.subr.mxu0 0.0
  %358 = vmatpush1.msra.mxu0 0.0
  %359 = vmatprep.subr.mxu0 0.0
  %360 = vmatpush1.msra.mxu0 %v332
  %361 = vmatprep.subr.mxu0 0.0
  %362 = vmatpush1.msra.mxu0 %v331
  %363 = vmatprep.subr.mxu0 0.0
  %364 = vmatpush1.msra.mxu0 %v330
  %365 = vmatprep.subr.mxu0 0.0
  %366 = vmatpush1.msra.mxu0 %v329
  %367 = vmatprep.subr.mxu0 0.0
  %368 = vmatpush1.msra.mxu0 %v328
  %369 = vmatprep.subr.mxu0 0.0
  %370 = vmatpush1.msra.mxu0 %v327
  %371 = vmatprep.subr.mxu0 0.0
  %372 = vmatpush1.msra.mxu0 %v326
  %373 = vmatprep.subr.mxu0 0.0
  %374 = vmatpush1.msra.mxu0 %v325
  %375 = vmatprep.subr.mxu0 0.0
  %376 = vmatpush2.msra.mxu0 0.0
  %377 = vmatprep.subr.mxu0 0.0
  %378 = vmatpush2.msra.mxu0 0.0
  %379 = vmatprep.subr.mxu0 0.0
  %380 = vmatpush2.msra.mxu0 0.0
  %381 = vmatprep.subr.mxu0 0.0
  %382 = vmatpush2.msra.mxu0 0.0
  %383 = vmatprep.subr.mxu0 0.0
  %384 = vmatpush2.msra.mxu0 0.0
  %385 = vmatprep.subr.mxu0 0.0
  %386 = vmatpush2.msra.mxu0 0.0
  %387 = vmatprep.subr.mxu0 0.0
  %388 = vmatpush2.msra.mxu0 0.0
  %389 = vmatprep.subr.mxu0 0.0
  %390 = vmatpush2.msra.mxu0 0.0
  %391 = vmatprep.subr.mxu0 0.0
  %392 = vmatpush2.msra.mxu0 0.0
  %393 = vmatprep.subr.mxu0 0.0
  %394 = vmatpush2.msra.mxu0 0.0
  %395 = vmatprep.subr.mxu0 0.0
  %396 = vmatpush2.msra.mxu0 0.0
  %397 = vmatprep.subr.mxu0 0.0
  %398 = vmatpush2.msra.mxu0 0.0
  %399 = vmatprep.subr.mxu0 0.0
  %400 = vmatpush2.msra.mxu0 0.0
  %401 = vmatprep.subr.mxu0 0.0
  %402 = vmatpush2.msra.mxu0 0.0
  %403 = vmatprep.subr.mxu0 0.0
  %404 = vmatpush2.msra.mxu0 0.0
  %405 = vmatprep.subr.mxu0 0.0
  %406 = vmatpush2.msra.mxu0 0.0
  %407 = vmatprep.mubr.f32.mxu0 0.0
  %408 = vmatmul.mubr.f32.gmra.mxu0 %v341
  %v409 = vpop.f32.mrf.mxu0
  %v410 = vadd.f32 %v338, %v409
  %v411 = vpop.f32.mrf.mxu0
  %412 = vdwg.mxu0
  %v413 = vmax.f32 %v410, 0.0
  %v414 = vld [vmem:[%s5] sm:$0xff]
  %v415 = vld [vmem:[%s5 + $0x8] sm:$0xff]
  %v416 = vld [vmem:[%s5 + $0x10] sm:$0xff]
  %v417 = vld [vmem:[%s5 + $0x18] sm:$0xff]
  %v418 = vld [vmem:[%s5 + $0x20] sm:$0xff]
  %v419 = vld [vmem:[%s5 + $0x28] sm:$0xff]
  %v420 = vld [vmem:[%s5 + $0x30] sm:$0xff]
  %v421 = vld [vmem:[%s5 + $0x38] sm:$0xff]
  %v422 = vld [vmem:[%s5 + $0x40] sm:$0xff]
  %v423 = vld [vmem:[%s5 + $0x48] sm:$0xff]
  %v424 = vld [vmem:[%s5 + $0x50] sm:$0xff]
  %v425 = vld [vmem:[%s5 + $0x58] sm:$0xff]
  %v426 = vld [vmem:[%s5 + $0x60] sm:$0xff]
  %v427 = vld [vmem:[%s5 + $0x68] sm:$0xff]
  %v428 = vld [vmem:[%s5 + $0x70] sm:$0xff]
  %v429 = vld [vmem:[%s5 + $0x78] sm:$0xff]
  %v430 = vld [vmem:[%s6] sm:$0x1]
  %v432 = vlaneseq
  %v433 = vshrl.u32 %v432, 7
  %v434 = vsub.s32 0, %v433
  %v435 = vrot.slane %v430, %v434
  %437 = vmatprep.subr.mxu0 0.0
  %438 = vmatpush1.msra.mxu0 %v429
  %439 = vmatprep.subr.mxu0 0.0
  %440 = vmatpush1.msra.mxu0 %v428
  %441 = vmatprep.subr.mxu0 0.0
  %442 = vmatpush1.msra.mxu0 %v427
  %443 = vmatprep.subr.mxu0 0.0
  %444 = vmatpush1.msra.mxu0 %v426
  %445 = vmatprep.subr.mxu0 0.0
  %446 = vmatpush1.msra.mxu0 %v425
  %447 = vmatprep.subr.mxu0 0.0
  %448 = vmatpush1.msra.mxu0 %v424
  %449 = vmatprep.subr.mxu0 0.0
  %450 = vmatpush1.msra.mxu0 %v423
  %451 = vmatprep.subr.mxu0 0.0
  %452 = vmatpush1.msra.mxu0 %v422
  %453 = vmatprep.subr.mxu0 0.0
  %454 = vmatpush1.msra.mxu0 %v421
  %455 = vmatprep.subr.mxu0 0.0
  %456 = vmatpush1.msra.mxu0 %v420
  %457 = vmatprep.subr.mxu0 0.0
  %458 = vmatpush1.msra.mxu0 %v419
  %459 = vmatprep.subr.mxu0 0.0
  %460 = vmatpush1.msra.mxu0 %v418
  %461 = vmatprep.subr.mxu0 0.0
  %462 = vmatpush1.msra.mxu0 %v417
  %463 = vmatprep.subr.mxu0 0.0
  %464 = vmatpush1.msra.mxu0 %v416
  %465 = vmatprep.subr.mxu0 0.0
  %466 = vmatpush1.msra.mxu0 %v415
  %467 = vmatprep.subr.mxu0 0.0
  %468 = vmatpush1.msra.mxu0 %v414
  %469 = vmatprep.subr.mxu0 0.0
  %470 = vmatpush2.msra.mxu0 0.0
  %471 = vmatprep.subr.mxu0 0.0
  %472 = vmatpush2.msra.mxu0 0.0
  %473 = vmatprep.subr.mxu0 0.0
  %474 = vmatpush2.msra.mxu0 0.0
  %475 = vmatprep.subr.mxu0 0.0
  %476 = vmatpush2.msra.mxu0 0.0
  %477 = vmatprep.subr.mxu0 0.0
  %478 = vmatpush2.msra.mxu0 0.0
  %479 = vmatprep.subr.mxu0 0.0
  %480 = vmatpush2.msra.mxu0 0.0
  %481 = vmatprep.subr.mxu0 0.0
  %482 = vmatpush2.msra.mxu0 0.0
  %483 = vmatprep.subr.mxu0 0.0
  %484 = vmatpush2.msra.mxu0 0.0
  %485 = vmatprep.subr.mxu0 0.0
  %486 = vmatpush2.msra.mxu0 0.0
  %487 = vmatprep.subr.mxu0 0.0
  %488 = vmatpush2.msra.mxu0 0.0
  %489 = vmatprep.subr.mxu0 0.0
  %490 = vmatpush2.msra.mxu0 0.0
  %491 = vmatprep.subr.mxu0 0.0
  %492 = vmatpush2.msra.mxu0 0.0
  %493 = vmatprep.subr.mxu0 0.0
  %494 = vmatpush2.msra.mxu0 0.0
  %495 = vmatprep.subr.mxu0 0.0
  %496 = vmatpush2.msra.mxu0 0.0
  %497 = vmatprep.subr.mxu0 0.0
  %498 = vmatpush2.msra.mxu0 0.0
  %499 = vmatprep.subr.mxu0 0.0
  %500 = vmatpush2.msra.mxu0 0.0
  %501 = vmatprep.mubr.f32.mxu0 0.0
  %502 = vmatmul.mubr.f32.gmra.mxu0 %v413
  %v503 = vpop.f32.mrf.mxu0
  %v504 = vadd.f32 %v435, %v503
  %v505 = vpop.f32.mrf.mxu0
  %506 = vdwg.mxu0
  %v507 = vlaneseq
  %v508 = vand.u32 %v507, 127
  %vm509 = vcmp.lt.s32.totalorder %v508, 6
  %vm510 = vcmp.ge.s32.totalorder %v508, 7
  %vm511 = vcmp.lt.s32.totalorder %v508, 32
  %vm512 = vmand %vm510, %vm511
  %v513 = vsel %vm509, %v504, -1e+30
  %514 = vmax.xlane.f32.xlu0 %v513
  %v515 = vpop.xlane.xlu0 %514
  %v516 = vsub.f32 %v513, %v515
  %v517 = vmul.f32 %v516, 1.442695
  %v518 = vpow.pop %v517
  %519 = vadd.xlane.f32.xlu0 %v518
  %v520 = vpop.xlane.xlu0 %519
  %v521 = vlog2.pop %v520
  %v522 = vmul.f32 %v521, 0.6931472
  %v523 = vadd.f32 %v515, %v522
  %v524 = vsel %vm512, %v504, -1e+30
  %525 = vmax.xlane.f32.xlu0 %v524
  %v526 = vpop.xlane.xlu0 %525
  %v527 = vsub.f32 %v524, %v526
  %v528 = vmul.f32 %v527, 1.442695
  %v529 = vpow.pop %v528
  %530 = vadd.xlane.f32.xlu0 %v529
  %v531 = vpop.xlane.xlu0 %530
  %v532 = vlog2.pop %v531
  %v533 = vmul.f32 %v532, 0.6931472
  %v534 = vadd.f32 %v526, %v533
  %v535 = vsel %vm512, %v534, 0.0
  %v536 = vsel %vm509, %v523, %v535
  %v537 = vsub.f32 %v504, %v536
  %538 = vst [vmem:[%s7] sm:$0xff] %v537
  // Predicated region
  $region30: #{attention_model_forward.5} parent=0 // pred_check
    _
  $region31: #{attention_model_forward.5} parent=0 // pred_check_branch
    %540 = sbr.rel (0) target = $region33
  $region32: #{attention_model_forward.5} parent=0 // pred_region
    _
  $region33: #{attention_model_forward.5} parent=0 // pred_fallthru
    _
  // Predicated region
  $region34: #{attention_model_forward.5} parent=0 // pred_check
    _
  $region35: #{attention_model_forward.5} parent=0 // pred_check_branch
    %542 = sbr.rel (0) target = $region37
  $region36: #{attention_model_forward.5} parent=0 // pred_region
    _
  $region37: #{attention_model_forward.5} parent=0 // pred_fallthru
    _

</llo_original>
